<compile_context>
chip_gen: v6e
topology: v6e:2x2x1
jax: 0.10.0
libtpu: 0.0.40
codegen_flags: <defaults>
</compile_context>

<pallas_src>
import functools
import numpy as np

import jax
import jax.numpy as jnp
from jax.experimental import pallas as pl
from jax.experimental.pallas import tpu as pltpu


# ---------------------------------------------------------------------------
# Fused Pallas kernel (one grid step == Bt batch elements)
# ---------------------------------------------------------------------------

def _tgod_fused_kernel(logits_ref, q_ref, tT_ref, pbox_ref, posrow_ref,
                       side_ref, out_ref, *, inv_temp):
    f32 = jnp.float32

    logits = logits_ref[...].astype(f32)               # (Bt, Q, L) (upcast if bf16)
    Bt, Q, L = logits.shape
    side = side_ref[...]                                # (Bt, 8, M) f32 packed side info
    M = side.shape[-1]
    T = tT_ref.shape[-1]

    qidx = side[:, 0:1, :]                              # (Bt, 1, M) matched query idx (-1 pad)
    tokf = side[:, 1:2, :]                              # (Bt, 1, M) positive token idx (-1 pad)
    valid_f = (qidx >= 0.0).astype(f32)                 # (Bt, 1, M)

    # one-hot scatter: S[b, q, m] = 1 iff query q of batch elem b sits in match slot m
    q_iota = jax.lax.broadcasted_iota(jnp.int32, (Bt, Q, M), 1).astype(f32)
    S = (q_iota == qidx).astype(f32)                    # (Bt, Q, M)
    matched = jnp.sum(S, axis=2, keepdims=True)         # (Bt, Q, 1) in {0, 1}

    # ----- labels: CE against target_sim built in-register ---------------------
    mx = jnp.max(logits, axis=2, keepdims=True)
    z = logits - mx
    logp = z - jnp.log(jnp.sum(jnp.exp(z), axis=2, keepdims=True))       # log_softmax

    lane_l = jax.lax.broadcasted_iota(jnp.int32, (Bt, Q, L), 2)
    noobj_onehot = (lane_l == (L - 1)).astype(f32)
    # bf16 one-hot matmul operands are lossless (values 0/1), single-pass MXU
    tsim = jnp.einsum("bqm,bml->bql", S.astype(jnp.bfloat16), posrow_ref[...],
                      preferred_element_type=f32)                        # (Bt, Q, L)
    tsim = tsim + (1.0 - matched) * noobj_onehot
    # NOTE: eos_coef is applied uniformly to every query (matched and not), exactly as
    # in the given PyTorch source; the scaling itself is done outside on the reduced sum.
    ce_sum = -jnp.sum(logp * tsim)

    # ----- cardinality (no-object logit via existing one-hot sum) ---------------
    NEG = f32(-1e30)
    noobj_logit = jnp.sum(logits * noobj_onehot, axis=2, keepdims=True)  # (Bt, Q, 1)
    best_other = jnp.max(jnp.where(noobj_onehot > 0, NEG, logits),
                         axis=2, keepdims=True)                          # (Bt, Q, 1)
    is_pos = (best_other >= noobj_logit).astype(f32)
    card_pred = jnp.sum(is_pos, axis=1, keepdims=True)                   # (Bt, 1, 1)
    n_tgt = jnp.sum(jnp.sum(valid_f, axis=2, keepdims=True),
                    axis=1, keepdims=True)                               # (Bt, 1, 1)
    card_err_sum = jnp.sum(jnp.abs(card_pred - n_tgt))

    # ----- contrastive (bf16 MXU operands, f32 accumulation) --------------------
    # tokens arrive pre-transposed to (D, T): plain (Q,D)x(D,T), no in-kernel transpose
    cl = jnp.einsum("bqd,bdt->bqt", q_ref[...], tT_ref[...],
                    preferred_element_type=f32) * inv_temp               # (Bt, Q, T)

    # per-query positive token index (at most one match slot per query -> exact sum)
    qtok = jnp.sum(S * tokf, axis=2, keepdims=True)                      # (Bt, Q, 1)
    lane_t = jax.lax.broadcasted_iota(jnp.int32, (Bt, Q, T), 2).astype(f32)
    mask = matched * (lane_t == qtok).astype(f32)                        # (Bt, Q, T)

    # single exp pass shared by both logsumexps (joint max per batch element)
    m_joint = jnp.max(jnp.max(cl, axis=2, keepdims=True), axis=1, keepdims=True)
    e = jnp.exp(cl - m_joint)
    lse_q = jnp.log(jnp.sum(e, axis=2, keepdims=True)) + m_joint         # (Bt, Q, 1)
    lse_t = jnp.log(jnp.sum(e, axis=1, keepdims=True)) + m_joint         # (Bt, 1, T)

    neg_masked = -cl * mask
    pos_q = jnp.sum(neg_masked, axis=2, keepdims=True)                   # (Bt, Q, 1)
    pos_t = jnp.sum(neg_masked, axis=1, keepdims=True)                   # (Bt, 1, T)
    n_t = jnp.sum(mask, axis=1, keepdims=True)                           # (Bt, 1, T)
    # nb_pos along the token axis == matched (one positive token per matched query)
    b2t = jnp.sum(jnp.where(matched > 0, pos_q / (matched + 1e-6) + lse_q, 0.0))
    t2b = jnp.sum(jnp.where(n_t > 0, pos_t / (n_t + 1e-6) + lse_t, 0.0))
    contr = 0.5 * (b2t + t2b)

    # ----- boxes: pairwise (Q, M) L1 / GIoU weighted by the one-hot S -----------
    # exact in f32, removes the wrapper-side gather + HBM round trip entirely
    pb = pbox_ref[...].astype(f32)                                       # (Bt, Q, 4)
    pcx, pcy, pw, ph = (pb[:, :, 0:1], pb[:, :, 1:2], pb[:, :, 2:3], pb[:, :, 3:4])
    tcx, tcy, tw, th = (side[:, 2:3, :], side[:, 3:4, :],
                        side[:, 4:5, :], side[:, 5:6, :])                # (Bt, 1, M)

    l1_pair = (jnp.abs(pcx - tcx) + jnp.abs(pcy - tcy)
               + jnp.abs(pw - tw) + jnp.abs(ph - th))                    # (Bt, Q, M)
    l1_sum = jnp.sum(l1_pair * S)

    sx1, sy1 = pcx - 0.5 * pw, pcy - 0.5 * ph
    sx2, sy2 = pcx + 0.5 * pw, pcy + 0.5 * ph
    tx1, ty1 = tcx - 0.5 * tw, tcy - 0.5 * th
    tx2, ty2 = tcx + 0.5 * tw, tcy + 0.5 * th
    area_s = pw * ph                                                     # (Bt, Q, 1)
    area_t = tw * th                                                     # (Bt, 1, M)
    iw = jnp.maximum(jnp.minimum(sx2, tx2) - jnp.maximum(sx1, tx1), 0.0)
    ih = jnp.maximum(jnp.minimum(sy2, ty2) - jnp.maximum(sy1, ty1), 0.0)
    inter = iw * ih
    union = area_s + area_t - inter        # no eps, matching the torch source; the
    iou = inter / union                    # padded dummy targets are non-degenerate
    ew = jnp.maximum(sx2, tx2) - jnp.minimum(sx1, tx1)
    eh = jnp.maximum(sy2, ty2) - jnp.minimum(sy1, ty1)
    earea = ew * eh
    giou = iou - (earea - union) / earea
    giou_sum = jnp.sum((1.0 - giou) * S)

    # ----- pack the five per-block partial sums into one lane-dense (1,128) row ---
    lane = jax.lax.broadcasted_iota(jnp.int32, (1, 128), 1)
    out_ref[0] = (jnp.where(lane == 0, ce_sum, 0.0)
                  + jnp.where(lane == 1, contr, 0.0)
                  + jnp.where(lane == 2, card_err_sum, 0.0)
                  + jnp.where(lane == 3, l1_sum, 0.0)
                  + jnp.where(lane == 4, giou_sum, 0.0))


# ---------------------------------------------------------------------------
# Batch-tile selection (VMEM budgeted; safe for v7x 64 MiB / v5e 16 MiB scoped)
# ---------------------------------------------------------------------------

def _vmem_bytes_per_batch(Q, L, D, T, M):
    in_b = (4 * Q * L          # logits f32
            + 2 * Q * D        # queries bf16
            + 2 * D * T        # tokens^T bf16
            + 4 * Q * 4        # pred boxes f32
            + 2 * M * L        # positive_map rows bf16
            + 4 * 8 * M)       # packed side f32
    tmp_b = 4 * (3 * Q * T + 3 * Q * L + 3 * Q * M)   # cl/e/mask, logp/tsim, S/pairwise
    return 2 * in_b + tmp_b    # double-buffered inputs + f32 temporaries


def _choose_batch_tile(B, Q, L, D, T, M, budget_bytes=24 << 20):
    per_b = max(1, _vmem_bytes_per_batch(Q, L, D, T, M))
    cap = max(1, budget_bytes // per_b)
    divs = [d for d in range(1, B + 1) if B % d == 0 and d <= cap] or [1]
    # prefer >= 2 grid steps so both v7x TensorCores get work under "parallel"
    pref = [d for d in divs if B // d >= 2]
    return max(pref) if pref else max(divs)


# ---------------------------------------------------------------------------
# Single jitted forward: fused pallas_call + tiny final reduce
# ---------------------------------------------------------------------------

@functools.partial(jax.jit, static_argnames=("eos_coef", "temperature", "bt"))
def _tgod_forward(pred_logits, pred_boxes, proj_queries, proj_tokens,
                  side, pos_rows, num_boxes, eos_coef, temperature, bt):
    B, Q, L = pred_logits.shape
    D = proj_queries.shape[-1]
    T = proj_tokens.shape[1]
    M = side.shape[-1]
    G = B // bt

    # one-time cheap XLA transposes / casts (fused); logits passed through untouched
    queries = proj_queries.astype(jnp.bfloat16)                   # (B, Q, D)
    tokens_t = jnp.swapaxes(proj_tokens, 1, 2).astype(jnp.bfloat16)  # (B, D, T)
    boxes = pred_boxes.astype(jnp.float32)                        # (B, Q, 4)
    pos_bf = pos_rows.astype(jnp.bfloat16)                        # (B, M, L), 0/1 lossless

    partials = pl.pallas_call(
        functools.partial(_tgod_fused_kernel, inv_temp=1.0 / temperature),
        out_shape=jax.ShapeDtypeStruct((G, 1, 128), jnp.float32),
        grid=(G,),
        in_specs=[
            pl.BlockSpec((bt, Q, L), lambda g: (g, 0, 0)),   # pred_logits
            pl.BlockSpec((bt, Q, D), lambda g: (g, 0, 0)),   # proj_queries (bf16)
            pl.BlockSpec((bt, D, T), lambda g: (g, 0, 0)),   # proj_tokens^T (bf16)
            pl.BlockSpec((bt, Q, 4), lambda g: (g, 0, 0)),   # pred_boxes
            pl.BlockSpec((bt, M, L), lambda g: (g, 0, 0)),   # positive_map rows (bf16)
            pl.BlockSpec((bt, 8, M), lambda g: (g, 0, 0)),   # packed side info
        ],
        out_specs=pl.BlockSpec((1, 1, 128), lambda g: (g, 0, 0)),
        compiler_params=pltpu.CompilerParams(
            dimension_semantics=("parallel",),
            vmem_limit_bytes=48 * 1024 * 1024),
    )(pred_logits, queries, tokens_t, boxes, pos_bf, side)

    inv_nb = 1.0 / num_boxes
    return {
        "loss_ce": jnp.sum(partials[:, 0, 0]) * eos_coef * inv_nb,
        "loss_contrastive": jnp.sum(partials[:, 0, 1]) * inv_nb,
        "cardinality_error": jnp.sum(partials[:, 0, 2]) / B,
        "loss_bbox": jnp.sum(partials[:, 0, 3]) * inv_nb,
        "loss_giou": jnp.sum(partials[:, 0, 4]) * inv_nb,
    }


# ---------------------------------------------------------------------------
# Host-side packing of the (ragged) matcher output into fixed-size arrays
# ---------------------------------------------------------------------------

def _build_match_arrays(indices, targets, positive_map, B, L, m_pad):
    positive_map = np.asarray(positive_map, np.float32)
    # mimic torch.nonzero(positive_map == 1)[tgt_idx][:, -1]
    nz = np.stack(np.nonzero(positive_map == 1), axis=1)

    # packed side block: row0 = matched query idx (-1 pad), row1 = positive token idx,
    # rows 2..5 = matched target boxes (cxcywh, non-degenerate dummy pads), rows 6..7 = 0
    side = np.zeros((B, 8, m_pad), np.float32)
    side[:, 0, :] = -1.0
    side[:, 1, :] = -1.0
    side[:, 2, :] = 0.5
    side[:, 3, :] = 0.5
    side[:, 4, :] = 0.2
    side[:, 5, :] = 0.2
    pos_rows = np.zeros((B, m_pad, L), np.float32)

    offset = 0
    for b, (src, tgt) in enumerate(indices):
        src = np.asarray(src)
        tgt = np.asarray(tgt)
        n = len(src)
        assert n <= m_pad, "increase max_matches"
        g = tgt + offset                                   # global target indices
        side[b, 0, :n] = src.astype(np.float32)
        side[b, 1, :n] = nz[g][:, -1].astype(np.float32)
        side[b, 2:6, :n] = np.asarray(targets[b]["boxes"], np.float32)[tgt].T
        pos_rows[b, :n, :] = positive_map[g]
        offset += len(targets[b]["boxes"])

    return jnp.asarray(side), jnp.asarray(pos_rows)


class SetCriterionTGODPallas:
    def __init__(self, num_classes, weight_dict, losses, eos_coef=0.1,
                 temperature=0.07, max_matches=16):
        self.num_classes = num_classes
        self.weight_dict = weight_dict
        self.losses = losses
        self.eos_coef = eos_coef
        self.temperature = temperature
        self.max_matches = max_matches

    def forward(self, outputs, targets, positive_map, indices):
        # TODO(synk): Hungarian matcher (scipy linear_sum_assignment), the distributed
        # all_reduce of num_boxes (world_size assumed 1) and the aux_outputs /
        # enc_outputs recursion have no Pallas equivalent; `indices` arrive precomputed
        # and the aux branches would just re-invoke the same fused kernel.
        pred_logits = outputs["pred_logits"]
        B, Q, L = pred_logits.shape
        D = outputs["proj_queries"].shape[-1]
        T = outputs["proj_tokens"].shape[1]
        num_boxes = float(max(sum(len(t["labels"]) for t in targets), 1))

        side, pos_rows = _build_match_arrays(
            indices, targets, positive_map, B, L, self.max_matches)
        bt = _choose_batch_tile(B, Q, L, D, T, self.max_matches)

        all_losses = _tgod_forward(
            pred_logits, outputs["pred_boxes"],
            outputs["proj_queries"], outputs["proj_tokens"],
            side, pos_rows, jnp.float32(num_boxes),
            eos_coef=self.eos_coef, temperature=self.temperature, bt=bt)

        out = {}
        for loss in self.losses:
            if loss == "labels":
                out["loss_ce"] = all_losses["loss_ce"]
            elif loss == "contrastive":
                out["loss_contrastive"] = all_losses["loss_contrastive"]
            elif loss == "cardinality":
                out["cardinality_error"] = all_losses["cardinality_error"]
            elif loss == "boxes":
                out["loss_bbox"] = all_losses["loss_bbox"]
                out["loss_giou"] = all_losses["loss_giou"]
        return out


# ---------------------------------------------------------------------------
# Independent numpy float64 reference (test only)
# ---------------------------------------------------------------------------

def _reference(outputs, targets, positive_map, indices, eos_coef, temperature):
    logits = np.asarray(outputs["pred_logits"], np.float64)
    B, Q, L = logits.shape
    num_boxes = float(max(sum(len(t["labels"]) for t in targets), 1))

    batch_idx = np.concatenate([np.full(len(s), i) for i, (s, _) in enumerate(indices)])
    src_idx = np.concatenate([np.asarray(s) for s, _ in indices])
    tgt_idx, off = [], 0
    for i, (_, t) in enumerate(indices):
        tgt_idx.append(np.asarray(t) + off)
        off += len(targets[i]["boxes"])
    tgt_idx = np.concatenate(tgt_idx)
    pmap = np.asarray(positive_map, np.float64)

    # labels
    m = logits.max(-1, keepdims=True)
    logp = logits - (m + np.log(np.exp(logits - m).sum(-1, keepdims=True)))
    tsim = np.zeros_like(logits)
    tsim[:, :, -1] = 1.0
    tsim[batch_idx, src_idx] = pmap[tgt_idx]
    loss_ce = (-(logp * tsim).sum(-1) * eos_coef).sum() / num_boxes

    # contrastive
    qe = np.asarray(outputs["proj_queries"], np.float64)
    te = np.asarray(outputs["proj_tokens"], np.float64)
    cl = np.einsum("bqd,btd->bqt", qe, te) / temperature
    nz = np.stack(np.nonzero(pmap == 1), axis=1)
    token_idx = nz[tgt_idx][:, -1]
    mask = np.zeros(cl.shape, bool)
    mask[batch_idx, src_idx, token_idx] = True
    pos = -cl * mask

    def lse(a, axis):
        mm = a.max(axis=axis, keepdims=True)
        return (mm + np.log(np.exp(a - mm).sum(axis=axis, keepdims=True))).squeeze(axis)

    pq, nq = pos.sum(2), mask.sum(2)
    b2t = np.where(nq > 0, pq / (nq + 1e-6) + lse(cl, 2), 0.0).sum()
    pt, nt = pos.sum(1), mask.sum(1)
    t2b = np.where(nt > 0, pt / (nt + 1e-6) + lse(cl, 1), 0.0).sum()
    loss_contrastive = (b2t + t2b) / 2.0 / num_boxes

    # cardinality
    card_pred = (logits.argmax(-1) != L - 1).sum(1)
    tgt_len = np.array([len(t["labels"]) for t in targets], np.float64)
    card_err = np.abs(card_pred - tgt_len).mean()

    # boxes
    src_b = np.asarray(outputs["pred_boxes"], np.float64)[batch_idx, src_idx]
    tgt_b = np.concatenate([np.asarray(t["boxes"], np.float64)[i]
                            for t, (_, i) in zip(targets, indices)], 0)
    loss_bbox = np.abs(src_b - tgt_b).sum() / num_boxes

    def xyxy(b):
        return np.stack([b[:, 0] - b[:, 2] / 2, b[:, 1] - b[:, 3] / 2,
                         b[:, 0] + b[:, 2] / 2, b[:, 1] + b[:, 3] / 2], -1)

    s, t = xyxy(src_b), xyxy(tgt_b)
    area_s = (s[:, 2] - s[:, 0]) * (s[:, 3] - s[:, 1])
    area_t = (t[:, 2] - t[:, 0]) * (t[:, 3] - t[:, 1])
    iw = np.maximum(np.minimum(s[:, 2], t[:, 2]) - np.maximum(s[:, 0], t[:, 0]), 0)
    ih = np.maximum(np.minimum(s[:, 3], t[:, 3]) - np.maximum(s[:, 1], t[:, 1]), 0)
    inter = iw * ih
    union = area_s + area_t - inter
    iou = inter / union
    ew = np.maximum(s[:, 2], t[:, 2]) - np.minimum(s[:, 0], t[:, 0])
    eh = np.maximum(s[:, 3], t[:, 3]) - np.minimum(s[:, 1], t[:, 1])
    earea = ew * eh
    giou = iou - (earea - union) / earea
    loss_giou = (1.0 - giou).sum() / num_boxes

    return {"loss_ce": loss_ce, "loss_contrastive": loss_contrastive,
            "cardinality_error": card_err, "loss_bbox": loss_bbox,
            "loss_giou": loss_giou}


# ---------------------------------------------------------------------------
# Main
# ---------------------------------------------------------------------------

if __name__ == "__main__":
    # batch, queries, classes/tokens (+1 no-object), proj dim -- B=4 so the kernel runs
    # with Bt=2 batch elements per block over a 2-step "parallel" grid.
    B, Q, L, D = 4, 8, 16, 32
    key = jax.random.PRNGKey(0)
    k1, k2, k3, k4, k5, k6, k7 = jax.random.split(key, 7)

    pred_logits = jax.random.normal(k1, (B, Q, L), jnp.float32)

    centers = jax.random.uniform(k2, (B, Q, 2), minval=0.3, maxval=0.7)
    whs = jax.random.uniform(k3, (B, Q, 2), minval=0.1, maxval=0.3)
    pred_boxes = jnp.concatenate([centers, whs], axis=-1)

    def _norm(x):
        return x / jnp.linalg.norm(x, axis=-1, keepdims=True)

    proj_queries = _norm(jax.random.normal(k4, (B, Q, D), jnp.float32))
    proj_tokens = _norm(jax.random.normal(k5, (B, L, D), jnp.float32))

    outputs = {"pred_logits": pred_logits, "pred_boxes": pred_boxes,
               "proj_queries": proj_queries, "proj_tokens": proj_tokens}

    # targets: 3 / 2 / 1 / 2 boxes per batch element (8 target boxes total)
    n_tgt = 8
    tgt_c = np.asarray(jax.random.uniform(k6, (n_tgt, 2), minval=0.3, maxval=0.7))
    tgt_wh = np.asarray(jax.random.uniform(k7, (n_tgt, 2), minval=0.1, maxval=0.3))
    all_tgt_boxes = np.concatenate([tgt_c, tgt_wh], axis=-1).astype(np.float32)
    targets = [
        {"labels": np.array([1, 3, 2]), "boxes": all_tgt_boxes[0:3]},
        {"labels": np.array([0, 4]), "boxes": all_tgt_boxes[3:5]},
        {"labels": np.array([2]), "boxes": all_tgt_boxes[5:6]},
        {"labels": np.array([5, 1]), "boxes": all_tgt_boxes[6:8]},
    ]

    # positive_map: one positive text token per target box (never the no-object column)
    positive_map = np.zeros((n_tgt, L), np.float32)
    for row, col in enumerate([2, 5, 7, 1, 4, 9, 3, 6]):
        positive_map[row, col] = 1.0

    # precomputed matcher output: list of (src_query_idx, tgt_box_idx) per batch element
    indices = [(np.array([1, 4, 6]), np.array([0, 2, 1])),
               (np.array([0, 3]), np.array([1, 0])),
               (np.array([5]), np.array([0])),
               (np.array([2, 7]), np.array([0, 1]))]

    criterion = SetCriterionTGODPallas(
        num_classes=L - 1, weight_dict={},
        losses=["labels", "boxes", "cardinality", "contrastive"],
        eos_coef=0.1, temperature=0.07, max_matches=8)

    losses = criterion.forward(outputs, targets, positive_map, indices)
    losses = jax.tree_util.tree_map(jax.block_until_ready, losses)

    ref = _reference(outputs, targets, positive_map, indices,
                     eos_coef=0.1, temperature=0.07)
    for k in ref:
        np.testing.assert_allclose(np.asarray(losses[k]), np.asarray(ref[k]),
                                   rtol=5e-2, atol=1e-2)

    print("KERNEL_OK")
</pallas_src>

<mosaic_0001>
module attributes {stable_mosaic.version = 11 : i64} {
  func.func @_tgod_fused_kernel(%arg0: i32, %arg1: memref<2x8x16xf32, #tpu.memory_space<vmem>>, %arg2: memref<2x8x32xbf16, #tpu.memory_space<vmem>>, %arg3: memref<2x32x16xbf16, #tpu.memory_space<vmem>>, %arg4: memref<2x8x4xf32, #tpu.memory_space<vmem>>, %arg5: memref<2x8x16xbf16, #tpu.memory_space<vmem>>, %arg6: memref<2x8x8xf32, #tpu.memory_space<vmem>>, %arg7: memref<1x1x128xf32, #tpu.memory_space<vmem>>) attributes {dimension_semantics = [#tpu.dimension_semantics<parallel>], iteration_bounds = array<i64: 2>, scalar_prefetch = 0 : i64, scratch_operands = 0 : i64, tpu.core_type = #tpu.core_type<tc>, window_params = [{transform_indices = @transform_0, window_bounds = array<i64: 2, 8, 16>}, {transform_indices = @transform_1, window_bounds = array<i64: 2, 8, 32>}, {transform_indices = @transform_2, window_bounds = array<i64: 2, 32, 16>}, {transform_indices = @transform_3, window_bounds = array<i64: 2, 8, 4>}, {transform_indices = @transform_4, window_bounds = array<i64: 2, 8, 16>}, {transform_indices = @transform_5, window_bounds = array<i64: 2, 8, 8>}, {transform_indices = @transform_6, window_bounds = array<i64: 1, 1, 128>}]} {
    %c0 = arith.constant 0 : index
    %c0_0 = arith.constant 0 : index
    %c0_1 = arith.constant 0 : index
    %0 = vector.load %arg1[%c0, %c0_0, %c0_1] : memref<2x8x16xf32, #tpu.memory_space<vmem>>, vector<2x8x16xf32>
    %c0_2 = arith.constant 0 : index
    %c0_3 = arith.constant 0 : index
    %c0_4 = arith.constant 0 : index
    %1 = vector.load %arg6[%c0_2, %c0_3, %c0_4] : memref<2x8x8xf32, #tpu.memory_space<vmem>>, vector<2x8x8xf32>
    %2 = vector.extract_strided_slice %1 {offsets = [0, 0, 0], sizes = [2, 1, 8], strides = [1, 1, 1]} : vector<2x8x8xf32> to vector<2x1x8xf32>
    %3 = vector.extract_strided_slice %1 {offsets = [0, 1, 0], sizes = [2, 1, 8], strides = [1, 1, 1]} : vector<2x8x8xf32> to vector<2x1x8xf32>
    %cst = arith.constant 0.000000e+00 : f32
    %4 = vector.broadcast %cst : f32 to vector<2x1x8xf32>
    %5 = arith.cmpf oge, %2, %4 : vector<2x1x8xf32>
    %6 = arith.extui %5 : vector<2x1x8xi1> to vector<2x1x8xi32>
    %7 = arith.sitofp %6 : vector<2x1x8xi32> to vector<2x1x8xf32>
    %8 = tpu.iota {dimensions = array<i32: 1>} : vector<2x8x8xi32>
    %9 = arith.sitofp %8 : vector<2x8x8xi32> to vector<2x8x8xf32>
    %10 = vector.broadcast %2 : vector<2x1x8xf32> to vector<2x8x8xf32>
    %11 = arith.cmpf oeq, %9, %10 : vector<2x8x8xf32>
    %12 = arith.extui %11 : vector<2x8x8xi1> to vector<2x8x8xi32>
    %13 = arith.sitofp %12 : vector<2x8x8xi32> to vector<2x8x8xf32>
    %cst_5 = arith.constant dense<0.000000e+00> : vector<2x8xf32>
    %14 = vector.multi_reduction <add>, %13, %cst_5 [2] : vector<2x8x8xf32> to vector<2x8xf32>
    %15 = vector.shape_cast %14 : vector<2x8xf32> to vector<2x8x1xf32>
    %cst_6 = arith.constant dense<0xFF800000> : vector<2x8xf32>
    %16 = vector.multi_reduction <maximumf>, %0, %cst_6 [2] : vector<2x8x16xf32> to vector<2x8xf32>
    %17 = vector.shape_cast %16 : vector<2x8xf32> to vector<2x8x1xf32>
    %18 = vector.broadcast %17 : vector<2x8x1xf32> to vector<2x8x16xf32>
    %19 = arith.subf %0, %18 : vector<2x8x16xf32>
    %20 = math.exp %19 : vector<2x8x16xf32>
    %cst_7 = arith.constant dense<0.000000e+00> : vector<2x8xf32>
    %21 = vector.multi_reduction <add>, %20, %cst_7 [2] : vector<2x8x16xf32> to vector<2x8xf32>
    %22 = vector.shape_cast %21 : vector<2x8xf32> to vector<2x8x1xf32>
    %23 = math.log %22 : vector<2x8x1xf32>
    %24 = vector.broadcast %23 : vector<2x8x1xf32> to vector<2x8x16xf32>
    %25 = arith.subf %19, %24 : vector<2x8x16xf32>
    %26 = tpu.iota {dimensions = array<i32: 2>} : vector<2x8x16xi32>
    %c15_i32 = arith.constant 15 : i32
    %27 = vector.broadcast %c15_i32 : i32 to vector<2x8x16xi32>
    %28 = arith.cmpi eq, %26, %27 : vector<2x8x16xi32>
    %29 = arith.extui %28 : vector<2x8x16xi1> to vector<2x8x16xi32>
    %30 = arith.sitofp %29 : vector<2x8x16xi32> to vector<2x8x16xf32>
    %31 = arith.truncf %13 : vector<2x8x8xf32> to vector<2x8x8xbf16>
    %c0_8 = arith.constant 0 : index
    %c0_9 = arith.constant 0 : index
    %c0_10 = arith.constant 0 : index
    %32 = vector.load %arg5[%c0_8, %c0_9, %c0_10] : memref<2x8x16xbf16, #tpu.memory_space<vmem>>, vector<2x8x16xbf16>
    "tpu.trace_start"() <{level = 10 : i32, message = "bqm,bml->bql"}> : () -> ()
    %cst_11 = arith.constant dense<0.000000e+00> : vector<2x8x16xf32>
    %33 = tpu.matmul %31, %32, %cst_11 {dimension_numbers = #tpu.dot_dimension_numbers<[2], [1], [1], [2], [0, 0, 0, 1, 1, 2], [0], [0]>} : vector<2x8x8xbf16>, vector<2x8x16xbf16>, vector<2x8x16xf32> -> vector<2x8x16xf32>
    "tpu.trace_stop"() : () -> ()
    %cst_12 = arith.constant 1.000000e+00 : f32
    %34 = vector.broadcast %cst_12 : f32 to vector<2x8x1xf32>
    %35 = arith.subf %34, %15 : vector<2x8x1xf32>
    %36 = vector.broadcast %35 : vector<2x8x1xf32> to vector<2x8x16xf32>
    %37 = arith.mulf %36, %30 : vector<2x8x16xf32>
    %38 = arith.addf %33, %37 : vector<2x8x16xf32>
    %39 = arith.mulf %25, %38 : vector<2x8x16xf32>
    %40 = vector.shape_cast %39 : vector<2x8x16xf32> to vector<1x2x8x16xf32>
    %cst_13 = arith.constant dense<0.000000e+00> : vector<1xf32>
    %41 = vector.multi_reduction <add>, %40, %cst_13 [1, 2, 3] : vector<1x2x8x16xf32> to vector<1xf32>
    %42 = vector.shape_cast %41 : vector<1xf32> to vector<1x1x1x1xf32>
    %43 = vector.extract %42[0, 0, 0, 0] : f32 from vector<1x1x1x1xf32>
    %cst_14 = arith.constant 0.000000e+00 : f32
    %44 = arith.subf %cst_14, %43 : f32
    %45 = arith.mulf %0, %30 : vector<2x8x16xf32>
    %cst_15 = arith.constant dense<0.000000e+00> : vector<2x8xf32>
    %46 = vector.multi_reduction <add>, %45, %cst_15 [2] : vector<2x8x16xf32> to vector<2x8xf32>
    %47 = vector.shape_cast %46 : vector<2x8xf32> to vector<2x8x1xf32>
    %cst_16 = arith.constant 0.000000e+00 : f32
    %48 = vector.broadcast %cst_16 : f32 to vector<2x8x16xf32>
    %49 = arith.cmpf ogt, %30, %48 : vector<2x8x16xf32>
    %cst_17 = arith.constant -1.000000e+30 : f32
    %50 = vector.broadcast %cst_17 : f32 to vector<2x8x16xf32>
    %51 = arith.select %49, %50, %0 : vector<2x8x16xi1>, vector<2x8x16xf32>
    %cst_18 = arith.constant dense<0xFF800000> : vector<2x8xf32>
    %52 = vector.multi_reduction <maximumf>, %51, %cst_18 [2] : vector<2x8x16xf32> to vector<2x8xf32>
    %53 = vector.shape_cast %52 : vector<2x8xf32> to vector<2x8x1xf32>
    %54 = arith.cmpf oge, %53, %47 : vector<2x8x1xf32>
    %55 = arith.extui %54 : vector<2x8x1xi1> to vector<2x8x1xi32>
    %56 = arith.sitofp %55 : vector<2x8x1xi32> to vector<2x8x1xf32>
    %cst_19 = arith.constant dense<0.000000e+00> : vector<2x1xf32>
    %57 = vector.multi_reduction <add>, %56, %cst_19 [1] : vector<2x8x1xf32> to vector<2x1xf32>
    %58 = vector.shape_cast %57 : vector<2x1xf32> to vector<2x1x1xf32>
    %cst_20 = arith.constant dense<0.000000e+00> : vector<2x1xf32>
    %59 = vector.multi_reduction <add>, %7, %cst_20 [2] : vector<2x1x8xf32> to vector<2x1xf32>
    %60 = vector.shape_cast %59 : vector<2x1xf32> to vector<2x1x1xf32>
    %cst_21 = arith.constant dense<0.000000e+00> : vector<2x1xf32>
    %61 = vector.multi_reduction <add>, %60, %cst_21 [1] : vector<2x1x1xf32> to vector<2x1xf32>
    %62 = vector.shape_cast %61 : vector<2x1xf32> to vector<2x1x1xf32>
    %63 = arith.subf %58, %62 : vector<2x1x1xf32>
    %64 = math.absf %63 : vector<2x1x1xf32>
    %65 = vector.shape_cast %64 : vector<2x1x1xf32> to vector<1x2x1x1xf32>
    %cst_22 = arith.constant dense<0.000000e+00> : vector<1xf32>
    %66 = vector.multi_reduction <add>, %65, %cst_22 [1, 2, 3] : vector<1x2x1x1xf32> to vector<1xf32>
    %67 = vector.shape_cast %66 : vector<1xf32> to vector<1x1x1x1xf32>
    %68 = vector.extract %67[0, 0, 0, 0] : f32 from vector<1x1x1x1xf32>
    %c0_23 = arith.constant 0 : index
    %c0_24 = arith.constant 0 : index
    %c0_25 = arith.constant 0 : index
    %69 = vector.load %arg2[%c0_23, %c0_24, %c0_25] : memref<2x8x32xbf16, #tpu.memory_space<vmem>>, vector<2x8x32xbf16>
    %c0_26 = arith.constant 0 : index
    %c0_27 = arith.constant 0 : index
    %c0_28 = arith.constant 0 : index
    %70 = vector.load %arg3[%c0_26, %c0_27, %c0_28] : memref<2x32x16xbf16, #tpu.memory_space<vmem>>, vector<2x32x16xbf16>
    "tpu.trace_start"() <{level = 10 : i32, message = "bqd,bdt->bqt"}> : () -> ()
    %cst_29 = arith.constant dense<0.000000e+00> : vector<2x8x16xf32>
    %71 = tpu.matmul %69, %70, %cst_29 {dimension_numbers = #tpu.dot_dimension_numbers<[2], [1], [1], [2], [0, 0, 0, 1, 1, 2], [0], [0]>} : vector<2x8x32xbf16>, vector<2x32x16xbf16>, vector<2x8x16xf32> -> vector<2x8x16xf32>
    "tpu.trace_stop"() : () -> ()
    %cst_30 = arith.constant 14.2857141 : f32
    %72 = vector.broadcast %cst_30 : f32 to vector<2x8x16xf32>
    %73 = arith.mulf %71, %72 : vector<2x8x16xf32>
    %74 = vector.broadcast %3 : vector<2x1x8xf32> to vector<2x8x8xf32>
    %75 = arith.mulf %13, %74 : vector<2x8x8xf32>
    %cst_31 = arith.constant dense<0.000000e+00> : vector<2x8xf32>
    %76 = vector.multi_reduction <add>, %75, %cst_31 [2] : vector<2x8x8xf32> to vector<2x8xf32>
    %77 = vector.shape_cast %76 : vector<2x8xf32> to vector<2x8x1xf32>
    %78 = tpu.iota {dimensions = array<i32: 2>} : vector<2x8x16xi32>
    %79 = arith.sitofp %78 : vector<2x8x16xi32> to vector<2x8x16xf32>
    %80 = vector.broadcast %77 : vector<2x8x1xf32> to vector<2x8x16xf32>
    %81 = arith.cmpf oeq, %79, %80 : vector<2x8x16xf32>
    %82 = arith.extui %81 : vector<2x8x16xi1> to vector<2x8x16xi32>
    %83 = arith.sitofp %82 : vector<2x8x16xi32> to vector<2x8x16xf32>
    %84 = vector.broadcast %15 : vector<2x8x1xf32> to vector<2x8x16xf32>
    %85 = arith.mulf %84, %83 : vector<2x8x16xf32>
    %cst_32 = arith.constant dense<0xFF800000> : vector<2x8xf32>
    %86 = vector.multi_reduction <maximumf>, %73, %cst_32 [2] : vector<2x8x16xf32> to vector<2x8xf32>
    %87 = vector.shape_cast %86 : vector<2x8xf32> to vector<2x8x1xf32>
    %cst_33 = arith.constant dense<0xFF800000> : vector<2x1xf32>
    %88 = vector.multi_reduction <maximumf>, %87, %cst_33 [1] : vector<2x8x1xf32> to vector<2x1xf32>
    %89 = vector.shape_cast %88 : vector<2x1xf32> to vector<2x1x1xf32>
    %90 = vector.broadcast %89 : vector<2x1x1xf32> to vector<2x8x16xf32>
    %91 = arith.subf %73, %90 : vector<2x8x16xf32>
    %92 = math.exp %91 : vector<2x8x16xf32>
    %cst_34 = arith.constant dense<0.000000e+00> : vector<2x8xf32>
    %93 = vector.multi_reduction <add>, %92, %cst_34 [2] : vector<2x8x16xf32> to vector<2x8xf32>
    %94 = vector.shape_cast %93 : vector<2x8xf32> to vector<2x8x1xf32>
    %95 = math.log %94 : vector<2x8x1xf32>
    %96 = vector.broadcast %89 : vector<2x1x1xf32> to vector<2x8x1xf32>
    %97 = arith.addf %95, %96 : vector<2x8x1xf32>
    %cst_35 = arith.constant dense<0.000000e+00> : vector<2x16xf32>
    %98 = vector.multi_reduction <add>, %92, %cst_35 [1] : vector<2x8x16xf32> to vector<2x16xf32>
    %99 = vector.shape_cast %98 : vector<2x16xf32> to vector<2x1x16xf32>
    %100 = math.log %99 : vector<2x1x16xf32>
    %101 = vector.broadcast %89 : vector<2x1x1xf32> to vector<2x1x16xf32>
    %102 = arith.addf %100, %101 : vector<2x1x16xf32>
    %cst_36 = arith.constant 0.000000e+00 : f32
    %103 = vector.broadcast %cst_36 : f32 to vector<2x8x16xf32>
    %104 = arith.subf %103, %73 : vector<2x8x16xf32>
    %105 = arith.mulf %104, %85 : vector<2x8x16xf32>
    %cst_37 = arith.constant dense<0.000000e+00> : vector<2x8xf32>
    %106 = vector.multi_reduction <add>, %105, %cst_37 [2] : vector<2x8x16xf32> to vector<2x8xf32>
    %107 = vector.shape_cast %106 : vector<2x8xf32> to vector<2x8x1xf32>
    %cst_38 = arith.constant dense<0.000000e+00> : vector<2x16xf32>
    %108 = vector.multi_reduction <add>, %105, %cst_38 [1] : vector<2x8x16xf32> to vector<2x16xf32>
    %109 = vector.shape_cast %108 : vector<2x16xf32> to vector<2x1x16xf32>
    %cst_39 = arith.constant dense<0.000000e+00> : vector<2x16xf32>
    %110 = vector.multi_reduction <add>, %85, %cst_39 [1] : vector<2x8x16xf32> to vector<2x16xf32>
    %111 = vector.shape_cast %110 : vector<2x16xf32> to vector<2x1x16xf32>
    %cst_40 = arith.constant 0.000000e+00 : f32
    %112 = vector.broadcast %cst_40 : f32 to vector<2x8x1xf32>
    %113 = arith.cmpf ogt, %15, %112 : vector<2x8x1xf32>
    %cst_41 = arith.constant 9.99999997E-7 : f32
    %114 = vector.broadcast %cst_41 : f32 to vector<2x8x1xf32>
    %115 = arith.addf %15, %114 : vector<2x8x1xf32>
    %116 = arith.divf %107, %115 : vector<2x8x1xf32>
    %117 = arith.addf %116, %97 : vector<2x8x1xf32>
    %cst_42 = arith.constant 0.000000e+00 : f32
    %118 = vector.broadcast %cst_42 : f32 to vector<2x8x1xf32>
    %119 = arith.select %113, %117, %118 : vector<2x8x1xi1>, vector<2x8x1xf32>
    %120 = vector.shape_cast %119 : vector<2x8x1xf32> to vector<1x2x8x1xf32>
    %cst_43 = arith.constant dense<0.000000e+00> : vector<1xf32>
    %121 = vector.multi_reduction <add>, %120, %cst_43 [1, 2, 3] : vector<1x2x8x1xf32> to vector<1xf32>
    %122 = vector.shape_cast %121 : vector<1xf32> to vector<1x1x1x1xf32>
    %123 = vector.extract %122[0, 0, 0, 0] : f32 from vector<1x1x1x1xf32>
    %cst_44 = arith.constant 0.000000e+00 : f32
    %124 = vector.broadcast %cst_44 : f32 to vector<2x1x16xf32>
    %125 = arith.cmpf ogt, %111, %124 : vector<2x1x16xf32>
    %cst_45 = arith.constant 9.99999997E-7 : f32
    %126 = vector.broadcast %cst_45 : f32 to vector<2x1x16xf32>
    %127 = arith.addf %111, %126 : vector<2x1x16xf32>
    %128 = arith.divf %109, %127 : vector<2x1x16xf32>
    %129 = arith.addf %128, %102 : vector<2x1x16xf32>
    %cst_46 = arith.constant 0.000000e+00 : f32
    %130 = vector.broadcast %cst_46 : f32 to vector<2x1x16xf32>
    %131 = arith.select %125, %129, %130 : vector<2x1x16xi1>, vector<2x1x16xf32>
    %132 = vector.shape_cast %131 : vector<2x1x16xf32> to vector<1x2x1x16xf32>
    %cst_47 = arith.constant dense<0.000000e+00> : vector<1xf32>
    %133 = vector.multi_reduction <add>, %132, %cst_47 [1, 2, 3] : vector<1x2x1x16xf32> to vector<1xf32>
    %134 = vector.shape_cast %133 : vector<1xf32> to vector<1x1x1x1xf32>
    %135 = vector.extract %134[0, 0, 0, 0] : f32 from vector<1x1x1x1xf32>
    %136 = arith.addf %123, %135 : f32
    %cst_48 = arith.constant 5.000000e-01 : f32
    %137 = arith.mulf %cst_48, %136 : f32
    %c0_49 = arith.constant 0 : index
    %c0_50 = arith.constant 0 : index
    %c0_51 = arith.constant 0 : index
    %138 = vector.load %arg4[%c0_49, %c0_50, %c0_51] : memref<2x8x4xf32, #tpu.memory_space<vmem>>, vector<2x8x4xf32>
    %139 = vector.extract_strided_slice %138 {offsets = [0, 0, 0], sizes = [2, 8, 1], strides = [1, 1, 1]} : vector<2x8x4xf32> to vector<2x8x1xf32>
    %140 = vector.extract_strided_slice %138 {offsets = [0, 0, 1], sizes = [2, 8, 1], strides = [1, 1, 1]} : vector<2x8x4xf32> to vector<2x8x1xf32>
    %141 = vector.extract_strided_slice %138 {offsets = [0, 0, 2], sizes = [2, 8, 1], strides = [1, 1, 1]} : vector<2x8x4xf32> to vector<2x8x1xf32>
    %142 = vector.extract_strided_slice %138 {offsets = [0, 0, 3], sizes = [2, 8, 1], strides = [1, 1, 1]} : vector<2x8x4xf32> to vector<2x8x1xf32>
    %143 = vector.extract_strided_slice %1 {offsets = [0, 2, 0], sizes = [2, 1, 8], strides = [1, 1, 1]} : vector<2x8x8xf32> to vector<2x1x8xf32>
    %144 = vector.extract_strided_slice %1 {offsets = [0, 3, 0], sizes = [2, 1, 8], strides = [1, 1, 1]} : vector<2x8x8xf32> to vector<2x1x8xf32>
    %145 = vector.extract_strided_slice %1 {offsets = [0, 4, 0], sizes = [2, 1, 8], strides = [1, 1, 1]} : vector<2x8x8xf32> to vector<2x1x8xf32>
    %146 = vector.extract_strided_slice %1 {offsets = [0, 5, 0], sizes = [2, 1, 8], strides = [1, 1, 1]} : vector<2x8x8xf32> to vector<2x1x8xf32>
    %147 = vector.broadcast %139 : vector<2x8x1xf32> to vector<2x8x8xf32>
    %148 = vector.broadcast %143 : vector<2x1x8xf32> to vector<2x8x8xf32>
    %149 = arith.subf %147, %148 : vector<2x8x8xf32>
    %150 = math.absf %149 : vector<2x8x8xf32>
    %151 = vector.broadcast %140 : vector<2x8x1xf32> to vector<2x8x8xf32>
    %152 = vector.broadcast %144 : vector<2x1x8xf32> to vector<2x8x8xf32>
    %153 = arith.subf %151, %152 : vector<2x8x8xf32>
    %154 = math.absf %153 : vector<2x8x8xf32>
    %155 = arith.addf %150, %154 : vector<2x8x8xf32>
    %156 = vector.broadcast %141 : vector<2x8x1xf32> to vector<2x8x8xf32>
    %157 = vector.broadcast %145 : vector<2x1x8xf32> to vector<2x8x8xf32>
    %158 = arith.subf %156, %157 : vector<2x8x8xf32>
    %159 = math.absf %158 : vector<2x8x8xf32>
    %160 = arith.addf %155, %159 : vector<2x8x8xf32>
    %161 = vector.broadcast %142 : vector<2x8x1xf32> to vector<2x8x8xf32>
    %162 = vector.broadcast %146 : vector<2x1x8xf32> to vector<2x8x8xf32>
    %163 = arith.subf %161, %162 : vector<2x8x8xf32>
    %164 = math.absf %163 : vector<2x8x8xf32>
    %165 = arith.addf %160, %164 : vector<2x8x8xf32>
    %166 = arith.mulf %165, %13 : vector<2x8x8xf32>
    %167 = vector.shape_cast %166 : vector<2x8x8xf32> to vector<1x2x8x8xf32>
    %cst_52 = arith.constant dense<0.000000e+00> : vector<1xf32>
    %168 = vector.multi_reduction <add>, %167, %cst_52 [1, 2, 3] : vector<1x2x8x8xf32> to vector<1xf32>
    %169 = vector.shape_cast %168 : vector<1xf32> to vector<1x1x1x1xf32>
    %170 = vector.extract %169[0, 0, 0, 0] : f32 from vector<1x1x1x1xf32>
    %cst_53 = arith.constant 5.000000e-01 : f32
    %171 = vector.broadcast %cst_53 : f32 to vector<2x8x1xf32>
    %172 = arith.mulf %171, %141 : vector<2x8x1xf32>
    %173 = arith.subf %139, %172 : vector<2x8x1xf32>
    %cst_54 = arith.constant 5.000000e-01 : f32
    %174 = vector.broadcast %cst_54 : f32 to vector<2x8x1xf32>
    %175 = arith.mulf %174, %142 : vector<2x8x1xf32>
    %176 = arith.subf %140, %175 : vector<2x8x1xf32>
    %cst_55 = arith.constant 5.000000e-01 : f32
    %177 = vector.broadcast %cst_55 : f32 to vector<2x8x1xf32>
    %178 = arith.mulf %177, %141 : vector<2x8x1xf32>
    %179 = arith.addf %139, %178 : vector<2x8x1xf32>
    %cst_56 = arith.constant 5.000000e-01 : f32
    %180 = vector.broadcast %cst_56 : f32 to vector<2x8x1xf32>
    %181 = arith.mulf %180, %142 : vector<2x8x1xf32>
    %182 = arith.addf %140, %181 : vector<2x8x1xf32>
    %cst_57 = arith.constant 5.000000e-01 : f32
    %183 = vector.broadcast %cst_57 : f32 to vector<2x1x8xf32>
    %184 = arith.mulf %183, %145 : vector<2x1x8xf32>
    %185 = arith.subf %143, %184 : vector<2x1x8xf32>
    %cst_58 = arith.constant 5.000000e-01 : f32
    %186 = vector.broadcast %cst_58 : f32 to vector<2x1x8xf32>
    %187 = arith.mulf %186, %146 : vector<2x1x8xf32>
    %188 = arith.subf %144, %187 : vector<2x1x8xf32>
    %cst_59 = arith.constant 5.000000e-01 : f32
    %189 = vector.broadcast %cst_59 : f32 to vector<2x1x8xf32>
    %190 = arith.mulf %189, %145 : vector<2x1x8xf32>
    %191 = arith.addf %143, %190 : vector<2x1x8xf32>
    %cst_60 = arith.constant 5.000000e-01 : f32
    %192 = vector.broadcast %cst_60 : f32 to vector<2x1x8xf32>
    %193 = arith.mulf %192, %146 : vector<2x1x8xf32>
    %194 = arith.addf %144, %193 : vector<2x1x8xf32>
    %195 = arith.mulf %141, %142 : vector<2x8x1xf32>
    %196 = arith.mulf %145, %146 : vector<2x1x8xf32>
    %197 = vector.broadcast %179 : vector<2x8x1xf32> to vector<2x8x8xf32>
    %198 = vector.broadcast %191 : vector<2x1x8xf32> to vector<2x8x8xf32>
    %199 = arith.minimumf %197, %198 : vector<2x8x8xf32>
    %200 = vector.broadcast %173 : vector<2x8x1xf32> to vector<2x8x8xf32>
    %201 = vector.broadcast %185 : vector<2x1x8xf32> to vector<2x8x8xf32>
    %202 = arith.maximumf %200, %201 : vector<2x8x8xf32>
    %203 = arith.subf %199, %202 : vector<2x8x8xf32>
    %cst_61 = arith.constant 0.000000e+00 : f32
    %204 = vector.broadcast %cst_61 : f32 to vector<2x8x8xf32>
    %205 = arith.maximumf %203, %204 : vector<2x8x8xf32>
    %206 = vector.broadcast %182 : vector<2x8x1xf32> to vector<2x8x8xf32>
    %207 = vector.broadcast %194 : vector<2x1x8xf32> to vector<2x8x8xf32>
    %208 = arith.minimumf %206, %207 : vector<2x8x8xf32>
    %209 = vector.broadcast %176 : vector<2x8x1xf32> to vector<2x8x8xf32>
    %210 = vector.broadcast %188 : vector<2x1x8xf32> to vector<2x8x8xf32>
    %211 = arith.maximumf %209, %210 : vector<2x8x8xf32>
    %212 = arith.subf %208, %211 : vector<2x8x8xf32>
    %cst_62 = arith.constant 0.000000e+00 : f32
    %213 = vector.broadcast %cst_62 : f32 to vector<2x8x8xf32>
    %214 = arith.maximumf %212, %213 : vector<2x8x8xf32>
    %215 = arith.mulf %205, %214 : vector<2x8x8xf32>
    %216 = vector.broadcast %195 : vector<2x8x1xf32> to vector<2x8x8xf32>
    %217 = vector.broadcast %196 : vector<2x1x8xf32> to vector<2x8x8xf32>
    %218 = arith.addf %216, %217 : vector<2x8x8xf32>
    %219 = arith.subf %218, %215 : vector<2x8x8xf32>
    %220 = arith.divf %215, %219 : vector<2x8x8xf32>
    %221 = vector.broadcast %179 : vector<2x8x1xf32> to vector<2x8x8xf32>
    %222 = vector.broadcast %191 : vector<2x1x8xf32> to vector<2x8x8xf32>
    %223 = arith.maximumf %221, %222 : vector<2x8x8xf32>
    %224 = vector.broadcast %173 : vector<2x8x1xf32> to vector<2x8x8xf32>
    %225 = vector.broadcast %185 : vector<2x1x8xf32> to vector<2x8x8xf32>
    %226 = arith.minimumf %224, %225 : vector<2x8x8xf32>
    %227 = arith.subf %223, %226 : vector<2x8x8xf32>
    %228 = vector.broadcast %182 : vector<2x8x1xf32> to vector<2x8x8xf32>
    %229 = vector.broadcast %194 : vector<2x1x8xf32> to vector<2x8x8xf32>
    %230 = arith.maximumf %228, %229 : vector<2x8x8xf32>
    %231 = vector.broadcast %176 : vector<2x8x1xf32> to vector<2x8x8xf32>
    %232 = vector.broadcast %188 : vector<2x1x8xf32> to vector<2x8x8xf32>
    %233 = arith.minimumf %231, %232 : vector<2x8x8xf32>
    %234 = arith.subf %230, %233 : vector<2x8x8xf32>
    %235 = arith.mulf %227, %234 : vector<2x8x8xf32>
    %236 = arith.subf %235, %219 : vector<2x8x8xf32>
    %237 = arith.divf %236, %235 : vector<2x8x8xf32>
    %238 = arith.subf %220, %237 : vector<2x8x8xf32>
    %cst_63 = arith.constant 1.000000e+00 : f32
    %239 = vector.broadcast %cst_63 : f32 to vector<2x8x8xf32>
    %240 = arith.subf %239, %238 : vector<2x8x8xf32>
    %241 = arith.mulf %240, %13 : vector<2x8x8xf32>
    %242 = vector.shape_cast %241 : vector<2x8x8xf32> to vector<1x2x8x8xf32>
    %cst_64 = arith.constant dense<0.000000e+00> : vector<1xf32>
    %243 = vector.multi_reduction <add>, %242, %cst_64 [1, 2, 3] : vector<1x2x8x8xf32> to vector<1xf32>
    %244 = vector.shape_cast %243 : vector<1xf32> to vector<1x1x1x1xf32>
    %245 = vector.extract %244[0, 0, 0, 0] : f32 from vector<1x1x1x1xf32>
    %246 = tpu.iota {dimensions = array<i32: 1>} : vector<1x128xi32>
    %c0_i32 = arith.constant 0 : i32
    %247 = vector.broadcast %c0_i32 : i32 to vector<1x128xi32>
    %248 = arith.cmpi eq, %246, %247 : vector<1x128xi32>
    %cst_65 = arith.constant 0.000000e+00 : f32
    %249 = vector.broadcast %44 : f32 to vector<1x128xf32>
    %250 = vector.broadcast %cst_65 : f32 to vector<1x128xf32>
    %251 = arith.select %248, %249, %250 : vector<1x128xi1>, vector<1x128xf32>
    %c1_i32 = arith.constant 1 : i32
    %252 = vector.broadcast %c1_i32 : i32 to vector<1x128xi32>
    %253 = arith.cmpi eq, %246, %252 : vector<1x128xi32>
    %cst_66 = arith.constant 0.000000e+00 : f32
    %254 = vector.broadcast %137 : f32 to vector<1x128xf32>
    %255 = vector.broadcast %cst_66 : f32 to vector<1x128xf32>
    %256 = arith.select %253, %254, %255 : vector<1x128xi1>, vector<1x128xf32>
    %257 = arith.addf %251, %256 : vector<1x128xf32>
    %c2_i32 = arith.constant 2 : i32
    %258 = vector.broadcast %c2_i32 : i32 to vector<1x128xi32>
    %259 = arith.cmpi eq, %246, %258 : vector<1x128xi32>
    %cst_67 = arith.constant 0.000000e+00 : f32
    %260 = vector.broadcast %68 : f32 to vector<1x128xf32>
    %261 = vector.broadcast %cst_67 : f32 to vector<1x128xf32>
    %262 = arith.select %259, %260, %261 : vector<1x128xi1>, vector<1x128xf32>
    %263 = arith.addf %257, %262 : vector<1x128xf32>
    %c3_i32 = arith.constant 3 : i32
    %264 = vector.broadcast %c3_i32 : i32 to vector<1x128xi32>
    %265 = arith.cmpi eq, %246, %264 : vector<1x128xi32>
    %cst_68 = arith.constant 0.000000e+00 : f32
    %266 = vector.broadcast %170 : f32 to vector<1x128xf32>
    %267 = vector.broadcast %cst_68 : f32 to vector<1x128xf32>
    %268 = arith.select %265, %266, %267 : vector<1x128xi1>, vector<1x128xf32>
    %269 = arith.addf %263, %268 : vector<1x128xf32>
    %c4_i32 = arith.constant 4 : i32
    %270 = vector.broadcast %c4_i32 : i32 to vector<1x128xi32>
    %271 = arith.cmpi eq, %246, %270 : vector<1x128xi32>
    %cst_69 = arith.constant 0.000000e+00 : f32
    %272 = vector.broadcast %245 : f32 to vector<1x128xf32>
    %273 = vector.broadcast %cst_69 : f32 to vector<1x128xf32>
    %274 = arith.select %271, %272, %273 : vector<1x128xi1>, vector<1x128xf32>
    %275 = arith.addf %269, %274 : vector<1x128xf32>
    %c0_70 = arith.constant 0 : index
    %c0_71 = arith.constant 0 : index
    %c0_72 = arith.constant 0 : index
    %276 = vector.load %arg7[%c0_70, %c0_71, %c0_72] : memref<1x1x128xf32, #tpu.memory_space<vmem>>, vector<1x1x128xf32>
    %277 = vector.shape_cast %276 : vector<1x1x128xf32> to vector<1x128xf32>
    %278 = vector.shape_cast %275 : vector<1x128xf32> to vector<1x1x128xf32>
    tpu.vector_store %arg7[%c0_70, %c0_71, %c0_72], %278 {strides = array<i32>} : memref<1x1x128xf32, #tpu.memory_space<vmem>>, vector<1x1x128xf32>,
    return
  }
  func.func @transform_0(%arg0: i32) -> (i32, i32, i32) {
    %c0_i32 = arith.constant 0 : i32
    %c0_i32_0 = arith.constant 0 : i32
    %c0_i32_1 = arith.constant 0 : i32
    return %arg0, %c0_i32, %c0_i32_0 : i32, i32, i32
  }
  func.func @transform_1(%arg0: i32) -> (i32, i32, i32) {
    %c0_i32 = arith.constant 0 : i32
    %c0_i32_0 = arith.constant 0 : i32
    %c0_i32_1 = arith.constant 0 : i32
    return %arg0, %c0_i32, %c0_i32_0 : i32, i32, i32
  }
  func.func @transform_2(%arg0: i32) -> (i32, i32, i32) {
    %c0_i32 = arith.constant 0 : i32
    %c0_i32_0 = arith.constant 0 : i32
    %c0_i32_1 = arith.constant 0 : i32
    return %arg0, %c0_i32, %c0_i32_0 : i32, i32, i32
  }
  func.func @transform_3(%arg0: i32) -> (i32, i32, i32) {
    %c0_i32 = arith.constant 0 : i32
    %c0_i32_0 = arith.constant 0 : i32
    %c0_i32_1 = arith.constant 0 : i32
    return %arg0, %c0_i32, %c0_i32_0 : i32, i32, i32
  }
  func.func @transform_4(%arg0: i32) -> (i32, i32, i32) {
    %c0_i32 = arith.constant 0 : i32
    %c0_i32_0 = arith.constant 0 : i32
    %c0_i32_1 = arith.constant 0 : i32
    return %arg0, %c0_i32, %c0_i32_0 : i32, i32, i32
  }
  func.func @transform_5(%arg0: i32) -> (i32, i32, i32) {
    %c0_i32 = arith.constant 0 : i32
    %c0_i32_0 = arith.constant 0 : i32
    %c0_i32_1 = arith.constant 0 : i32
    return %arg0, %c0_i32, %c0_i32_0 : i32, i32, i32
  }
  func.func @transform_6(%arg0: i32) -> (i32, i32, i32) {
    %c0_i32 = arith.constant 0 : i32
    %c0_i32_0 = arith.constant 0 : i32
    %c0_i32_1 = arith.constant 0 : i32
    return %arg0, %c0_i32, %c0_i32_0 : i32, i32, i32
  }
}

</mosaic_0001>

<llo_original>
// kernel: _tgod_forward.1
$region0: #{_tgod_forward.1}
  #allocation0 [shape = 'u32[]', space=smem, size = 0x4, offset = 0x4, fixed_abs, tag = 'smem constant byte address 0x4 - core index']
  #allocation1 [shape = 'u32[144,128]{1,0:T(1,128)}', space=vmem, size = 0x12000, scoped, tag = 'internal scratch']
  %s0 = inlined_call_operand.vmem [shape: f32[4,8,16], index: 0, kind: input, shape index: {}]
  %s1 = inlined_call_operand.vmem [shape: bf16[4,8,32], index: 1, kind: input, shape index: {}]
  %s2 = inlined_call_operand.vmem [shape: bf16[4,32,16], index: 2, kind: input, shape index: {}]
  %s3 = inlined_call_operand.vmem [shape: f32[4,8,4], index: 3, kind: input, shape index: {}]
  %s4 = inlined_call_operand.vmem [shape: bf16[4,8,16], index: 4, kind: input, shape index: {}]
  %s5 = inlined_call_operand.vmem [shape: f32[4,8,8], index: 5, kind: input, shape index: {}]
  %s6 = inlined_call_operand.vmem [shape: f32[2,1,128], index: 6, kind: output, shape index: {}]
  %s7 = sld [smem:[#allocation0]]
  $region57: #{_tgod_forward.1} parent=0
    _
  %s9 = ssub.s32 1, %s7
  %s10 = scalar_select 0, %s9, %s7
  loop: start=0, step=1, limit=4
  $region2: #{_tgod_forward.1} parent=0 // loop_pre_header
    _
  $region3: #{_tgod_forward.1} parent=0 // loop_header
    %s12 = sphi 0, %s16
    %p13 = scmp.ge.s32.totalorder %s12, 4
    %s22 = sphi 0, %s24
    %s25 = sphi 0, %s22
    %s26 = sphi 0, %s25
    %s42 = sphi 0, %s26
    %s48 = sphi 0, %s50
    %s51 = sphi 0, %s48
    %s52 = sphi 0, %s51
    %s68 = sphi 0, %s52
    %s74 = sphi 0, %s76
    %s77 = sphi 0, %s74
    %s78 = sphi 0, %s77
    %s94 = sphi 0, %s78
    %s100 = sphi 0, %s102
    %s103 = sphi 0, %s100
    %s104 = sphi 0, %s103
    %s120 = sphi 0, %s104
    %s126 = sphi 0, %s128
    %s129 = sphi 0, %s126
    %s130 = sphi 0, %s129
    %s146 = sphi 0, %s130
    %s152 = sphi 0, %s154
    %s155 = sphi 0, %s152
    %s156 = sphi 0, %s155
    %s172 = sphi 0, %s156
    %s178 = sphi 0, %s180
    %s181 = sphi 0, %s178
    %s182 = sphi 0, %s181
    %s198 = sphi 0, %s182
  $region4: #{_tgod_forward.1} parent=0 // loop_header_branch
    %15 = sbr.rel (%p13) target = $region8
  $region5: #{_tgod_forward.1} parent=0 // loop_body
    %s17 = ssub.s32 %s12, 1
    %s18 = ssub.s32 %s12, 2
    %s19 = sadd.s32 %s12, 1
    %s20 = ssub.s32 %s12, %s19
    %p21 = scmp.eq.s32.totalorder %s20, 0
    %s23 = sadd.s32 %s22, 1
    %s24 = scalar_select %p21, %s22, %s23
    %p27 = pneg %p21
    %p28 = scmp.eq.s32.totalorder %s12, 1
    %p29 = por %p27, %p28
    %p30 = scmp.ne.s32.totalorder %s22, %s25
    %p31 = scmp.eq.s32.totalorder %s12, 0
    %p32 = por %p30, %p31
    %p33 = scmp.ne.s32.totalorder %s22, %s25
    %p34 = scmp.eq.s32.totalorder %s17, 1
    %p35 = por %p33, %p34
    %p36 = scmp.ne.s32.totalorder %s25, %s26
    %p37 = scmp.eq.s32.totalorder %s17, 0
    %p38 = por %p36, %p37
    %p39 = scmp.ne.s32.totalorder %s25, %s26
    %p40 = scmp.eq.s32.totalorder %s18, 1
    %p41 = por %p39, %p40
    %p43 = scmp.ne.s32.totalorder %s26, %s42
    %p44 = scmp.eq.s32.totalorder %s18, 0
    %p45 = por %p43, %p44
    %s46 = ssub.s32 %s12, %s19
    %p47 = scmp.eq.s32.totalorder %s46, 0
    %s49 = sadd.s32 %s48, 1
    %s50 = scalar_select %p47, %s48, %s49
    %p53 = pneg %p47
    %p54 = scmp.eq.s32.totalorder %s12, 1
    %p55 = por %p53, %p54
    %p56 = scmp.ne.s32.totalorder %s48, %s51
    %p57 = scmp.eq.s32.totalorder %s12, 0
    %p58 = por %p56, %p57
    %p59 = scmp.ne.s32.totalorder %s48, %s51
    %p60 = scmp.eq.s32.totalorder %s17, 1
    %p61 = por %p59, %p60
    %p62 = scmp.ne.s32.totalorder %s51, %s52
    %p63 = scmp.eq.s32.totalorder %s17, 0
    %p64 = por %p62, %p63
    %p65 = scmp.ne.s32.totalorder %s51, %s52
    %p66 = scmp.eq.s32.totalorder %s18, 1
    %p67 = por %p65, %p66
    %p69 = scmp.ne.s32.totalorder %s52, %s68
    %p70 = scmp.eq.s32.totalorder %s18, 0
    %p71 = por %p69, %p70
    %s72 = ssub.s32 %s12, %s19
    %p73 = scmp.eq.s32.totalorder %s72, 0
    %s75 = sadd.s32 %s74, 1
    %s76 = scalar_select %p73, %s74, %s75
    %p79 = pneg %p73
    %p80 = scmp.eq.s32.totalorder %s12, 1
    %p81 = por %p79, %p80
    %p82 = scmp.ne.s32.totalorder %s74, %s77
    %p83 = scmp.eq.s32.totalorder %s12, 0
    %p84 = por %p82, %p83
    %p85 = scmp.ne.s32.totalorder %s74, %s77
    %p86 = scmp.eq.s32.totalorder %s17, 1
    %p87 = por %p85, %p86
    %p88 = scmp.ne.s32.totalorder %s77, %s78
    %p89 = scmp.eq.s32.totalorder %s17, 0
    %p90 = por %p88, %p89
    %p91 = scmp.ne.s32.totalorder %s77, %s78
    %p92 = scmp.eq.s32.totalorder %s18, 1
    %p93 = por %p91, %p92
    %p95 = scmp.ne.s32.totalorder %s78, %s94
    %p96 = scmp.eq.s32.totalorder %s18, 0
    %p97 = por %p95, %p96
    %s98 = ssub.s32 %s12, %s19
    %p99 = scmp.eq.s32.totalorder %s98, 0
    %s101 = sadd.s32 %s100, 1
    %s102 = scalar_select %p99, %s100, %s101
    %p105 = pneg %p99
    %p106 = scmp.eq.s32.totalorder %s12, 1
    %p107 = por %p105, %p106
    %p108 = scmp.ne.s32.totalorder %s100, %s103
    %p109 = scmp.eq.s32.totalorder %s12, 0
    %p110 = por %p108, %p109
    %p111 = scmp.ne.s32.totalorder %s100, %s103
    %p112 = scmp.eq.s32.totalorder %s17, 1
    %p113 = por %p111, %p112
    %p114 = scmp.ne.s32.totalorder %s103, %s104
    %p115 = scmp.eq.s32.totalorder %s17, 0
    %p116 = por %p114, %p115
    %p117 = scmp.ne.s32.totalorder %s103, %s104
    %p118 = scmp.eq.s32.totalorder %s18, 1
    %p119 = por %p117, %p118
    %p121 = scmp.ne.s32.totalorder %s104, %s120
    %p122 = scmp.eq.s32.totalorder %s18, 0
    %p123 = por %p121, %p122
    %s124 = ssub.s32 %s12, %s19
    %p125 = scmp.eq.s32.totalorder %s124, 0
    %s127 = sadd.s32 %s126, 1
    %s128 = scalar_select %p125, %s126, %s127
    %p131 = pneg %p125
    %p132 = scmp.eq.s32.totalorder %s12, 1
    %p133 = por %p131, %p132
    %p134 = scmp.ne.s32.totalorder %s126, %s129
    %p135 = scmp.eq.s32.totalorder %s12, 0
    %p136 = por %p134, %p135
    %p137 = scmp.ne.s32.totalorder %s126, %s129
    %p138 = scmp.eq.s32.totalorder %s17, 1
    %p139 = por %p137, %p138
    %p140 = scmp.ne.s32.totalorder %s129, %s130
    %p141 = scmp.eq.s32.totalorder %s17, 0
    %p142 = por %p140, %p141
    %p143 = scmp.ne.s32.totalorder %s129, %s130
    %p144 = scmp.eq.s32.totalorder %s18, 1
    %p145 = por %p143, %p144
    %p147 = scmp.ne.s32.totalorder %s130, %s146
    %p148 = scmp.eq.s32.totalorder %s18, 0
    %p149 = por %p147, %p148
    %s150 = ssub.s32 %s12, %s19
    %p151 = scmp.eq.s32.totalorder %s150, 0
    %s153 = sadd.s32 %s152, 1
    %s154 = scalar_select %p151, %s152, %s153
    %p157 = pneg %p151
    %p158 = scmp.eq.s32.totalorder %s12, 1
    %p159 = por %p157, %p158
    %p160 = scmp.ne.s32.totalorder %s152, %s155
    %p161 = scmp.eq.s32.totalorder %s12, 0
    %p162 = por %p160, %p161
    %p163 = scmp.ne.s32.totalorder %s152, %s155
    %p164 = scmp.eq.s32.totalorder %s17, 1
    %p165 = por %p163, %p164
    %p166 = scmp.ne.s32.totalorder %s155, %s156
    %p167 = scmp.eq.s32.totalorder %s17, 0
    %p168 = por %p166, %p167
    %p169 = scmp.ne.s32.totalorder %s155, %s156
    %p170 = scmp.eq.s32.totalorder %s18, 1
    %p171 = por %p169, %p170
    %p173 = scmp.ne.s32.totalorder %s156, %s172
    %p174 = scmp.eq.s32.totalorder %s18, 0
    %p175 = por %p173, %p174
    %s176 = ssub.s32 %s12, %s19
    %p177 = scmp.eq.s32.totalorder %s176, 0
    %s179 = sadd.s32 %s178, 1
    %s180 = scalar_select %p177, %s178, %s179
    %p183 = pneg %p177
    %p184 = scmp.eq.s32.totalorder %s12, 1
    %p185 = por %p183, %p184
    %p186 = scmp.ne.s32.totalorder %s178, %s181
    %p187 = scmp.eq.s32.totalorder %s12, 0
    %p188 = por %p186, %p187
    %p189 = scmp.ne.s32.totalorder %s178, %s181
    %p190 = scmp.eq.s32.totalorder %s17, 1
    %p191 = por %p189, %p190
    %p192 = scmp.ne.s32.totalorder %s181, %s182
    %p193 = scmp.eq.s32.totalorder %s17, 0
    %p194 = por %p192, %p193
    %p195 = scmp.ne.s32.totalorder %s181, %s182
    %p196 = scmp.eq.s32.totalorder %s18, 1
    %p197 = por %p195, %p196
    %p199 = scmp.ne.s32.totalorder %s182, %s198
    %p200 = scmp.eq.s32.totalorder %s18, 0
    %p201 = por %p199, %p200
    %p202 = scmp.le.s32.totalorder 1, %s12
    %p203 = scmp.lt.s32.totalorder %s12, 3
    %p204 = pnand %p202, %p203
    %p205 = pneg %p204
    // Predicated region
    $region9: #{_tgod_forward.1} parent=5 // pred_check
      _
    $region10: #{_tgod_forward.1} parent=5 // pred_check_branch
      %207 = sbr.rel (%p204) target = $region12
    $region11: #{_tgod_forward.1} parent=5 // pred_region
      %s208 = ssub.s32 %s12, 1
    $region12: #{_tgod_forward.1} parent=5 // pred_fallthru
      _
    %p209 = scmp.lt.s32.totalorder %s12, 2
    // Predicated region
    $region13: #{_tgod_forward.1} parent=5 // pred_check
      %p210 = pneg %p209
    $region14: #{_tgod_forward.1} parent=5 // pred_check_branch
      %212 = sbr.rel (%p210) target = $region16
    $region15: #{_tgod_forward.1} parent=5 // pred_region
      // Predicated region
      $region17: #{_tgod_forward.1} parent=15 // pred_check
        %p213 = pneg %p32
      $region18: #{_tgod_forward.1} parent=15 // pred_check_branch
        %215 = sbr.rel (%p213) target = $region20
      $region19: #{_tgod_forward.1} parent=15 // pred_region
        %s216 = smul.u32 2, %s12
        %p217 = scmp.lt.s32.totalorder %s216, 3
        %s218 = scalar_select %p217, %s216, 3
        %s219 = smul.addr %s218, 8
        %s220 = scalar_lea.vmem %s0, %s219
        %s221 = smul.u32 2, %s12
      $region20: #{_tgod_forward.1} parent=15 // pred_fallthru
        _
      // Predicated region
      $region21: #{_tgod_forward.1} parent=15 // pred_check
        %p222 = pneg %p58
      $region22: #{_tgod_forward.1} parent=15 // pred_check_branch
        %224 = sbr.rel (%p222) target = $region24
      $region23: #{_tgod_forward.1} parent=15 // pred_region
        %s225 = smul.u32 2, %s12
        %p226 = scmp.lt.s32.totalorder %s225, 3
        %s227 = scalar_select %p226, %s225, 3
        %s228 = smul.addr %s227, 4
        %s229 = scalar_lea.vmem %s1, %s228
        %s230 = smul.u32 2, %s12
      $region24: #{_tgod_forward.1} parent=15 // pred_fallthru
        _
      // Predicated region
      $region25: #{_tgod_forward.1} parent=15 // pred_check
        %p231 = pneg %p84
      $region26: #{_tgod_forward.1} parent=15 // pred_check_branch
        %233 = sbr.rel (%p231) target = $region28
      $region27: #{_tgod_forward.1} parent=15 // pred_region
        %s234 = smul.u32 2, %s12
        %p235 = scmp.lt.s32.totalorder %s234, 3
        %s236 = scalar_select %p235, %s234, 3
        %s237 = smul.addr %s236, 4
        %s238 = smul.addr %s237, 4
        %s239 = scalar_lea.vmem %s2, %s238
        %s240 = smul.u32 2, %s12
      $region28: #{_tgod_forward.1} parent=15 // pred_fallthru
        _
      // Predicated region
      $region29: #{_tgod_forward.1} parent=15 // pred_check
        %p241 = pneg %p110
      $region30: #{_tgod_forward.1} parent=15 // pred_check_branch
        %243 = sbr.rel (%p241) target = $region32
      $region31: #{_tgod_forward.1} parent=15 // pred_region
        %s244 = smul.u32 2, %s12
        %p245 = scmp.lt.s32.totalorder %s244, 3
        %s246 = scalar_select %p245, %s244, 3
        %s247 = smul.addr %s246, 8
        %s248 = scalar_lea.vmem %s3, %s247
        %s249 = smul.u32 2, %s12
      $region32: #{_tgod_forward.1} parent=15 // pred_fallthru
        _
      // Predicated region
      $region33: #{_tgod_forward.1} parent=15 // pred_check
        %p250 = pneg %p136
      $region34: #{_tgod_forward.1} parent=15 // pred_check_branch
        %252 = sbr.rel (%p250) target = $region36
      $region35: #{_tgod_forward.1} parent=15 // pred_region
        %s253 = smul.u32 2, %s12
        %p254 = scmp.lt.s32.totalorder %s253, 3
        %s255 = scalar_select %p254, %s253, 3
        %s256 = smul.addr %s255, 4
        %s257 = scalar_lea.vmem %s4, %s256
        %s258 = smul.u32 2, %s12
      $region36: #{_tgod_forward.1} parent=15 // pred_fallthru
        _
      // Predicated region
      $region37: #{_tgod_forward.1} parent=15 // pred_check
        %p259 = pneg %p162
      $region38: #{_tgod_forward.1} parent=15 // pred_check_branch
        %261 = sbr.rel (%p259) target = $region40
      $region39: #{_tgod_forward.1} parent=15 // pred_region
        %s262 = smul.u32 2, %s12
        %p263 = scmp.lt.s32.totalorder %s262, 3
        %s264 = scalar_select %p263, %s262, 3
        %s265 = smul.addr %s264, 8
        %s266 = scalar_lea.vmem %s5, %s265
        %s267 = smul.u32 2, %s12
      $region40: #{_tgod_forward.1} parent=15 // pred_fallthru
        _
    $region16: #{_tgod_forward.1} parent=5 // pred_fallthru
      _
    %p268 = scmp.le.s32.totalorder 1, %s12
    %p269 = scmp.lt.s32.totalorder %s12, 3
    %p270 = pnand %p268, %p269
    %p271 = pneg %p270
    // Predicated region
    $region41: #{_tgod_forward.1} parent=5 // pred_check
      _
    $region42: #{_tgod_forward.1} parent=5 // pred_check_branch
      %273 = sbr.rel (%p270) target = $region44
    $region43: #{_tgod_forward.1} parent=5 // pred_region
      %s274 = ssub.s32 %s12, 1
      %s275 = smul.u32 2, %s17
      %p276 = scmp.lt.s32.totalorder %s275, 3
      %s277 = scalar_select %p276, %s275, 3
      %s278 = smul.addr %s277, 8
      %s279 = scalar_lea.vmem %s0, %s278
      %p280 = pneg %p38
      %p281 = pneg %p35
      %s282 = smul.u32 2, %s17
      %p283 = scmp.lt.s32.totalorder %s282, 3
      %s284 = scalar_select %p283, %s282, 3
      %s285 = smul.addr %s284, 4
      %s286 = scalar_lea.vmem %s1, %s285
      %p287 = pneg %p64
      %p288 = pneg %p61
      %s289 = smul.u32 2, %s17
      %p290 = scmp.lt.s32.totalorder %s289, 3
      %s291 = scalar_select %p290, %s289, 3
      %s292 = smul.addr %s291, 4
      %s293 = smul.addr %s292, 4
      %s294 = scalar_lea.vmem %s2, %s293
      %p295 = pneg %p90
      %p296 = pneg %p87
      %s297 = smul.u32 2, %s17
      %p298 = scmp.lt.s32.totalorder %s297, 3
      %s299 = scalar_select %p298, %s297, 3
      %s300 = smul.addr %s299, 8
      %s301 = scalar_lea.vmem %s3, %s300
      %p302 = pneg %p116
      %p303 = pneg %p113
      %s304 = smul.u32 2, %s17
      %p305 = scmp.lt.s32.totalorder %s304, 3
      %s306 = scalar_select %p305, %s304, 3
      %s307 = smul.addr %s306, 4
      %s308 = scalar_lea.vmem %s4, %s307
      %p309 = pneg %p142
      %p310 = pneg %p139
      %s311 = smul.u32 2, %s17
      %p312 = scmp.lt.s32.totalorder %s311, 3
      %s313 = scalar_select %p312, %s311, 3
      %s314 = smul.addr %s313, 8
      %s315 = scalar_lea.vmem %s5, %s314
      %p316 = pneg %p168
      %p317 = pneg %p165
      %p318 = pneg %p194
      %p319 = pneg %p191
      %p320 = scmp.lt.s32.totalorder %s17, 1
      %s321 = scalar_select %p320, %s17, 1
      %s322 = scalar_lea.vmem %s6, %s321
      %s323 = smul.u32 2, %s17
      %p324 = scmp.lt.s32.totalorder %s323, 3
      %s325 = scalar_select %p324, %s323, 3
      %s326 = smul.addr %s325, 8
      %s327 = scalar_lea.vmem %s0, %s326
      %s328 = smul.u32 2, %s17
      %s329 = smul.u32 2, %s17
      %p330 = scmp.lt.s32.totalorder %s329, 3
      %s331 = scalar_select %p330, %s329, 3
      %s332 = smul.addr %s331, 4
      %s333 = scalar_lea.vmem %s1, %s332
      %s334 = smul.u32 2, %s17
      %s335 = smul.u32 2, %s17
      %p336 = scmp.lt.s32.totalorder %s335, 3
      %s337 = scalar_select %p336, %s335, 3
      %s338 = smul.addr %s337, 4
      %s339 = smul.addr %s338, 4
      %s340 = scalar_lea.vmem %s2, %s339
      %s341 = smul.u32 2, %s17
      %s342 = smul.u32 2, %s17
      %p343 = scmp.lt.s32.totalorder %s342, 3
      %s344 = scalar_select %p343, %s342, 3
      %s345 = smul.addr %s344, 8
      %s346 = scalar_lea.vmem %s3, %s345
      %s347 = smul.u32 2, %s17
      %s348 = smul.u32 2, %s17
      %p349 = scmp.lt.s32.totalorder %s348, 3
      %s350 = scalar_select %p349, %s348, 3
      %s351 = smul.addr %s350, 4
      %s352 = scalar_lea.vmem %s4, %s351
      %s353 = smul.u32 2, %s17
      %s354 = smul.u32 2, %s17
      %p355 = scmp.lt.s32.totalorder %s354, 3
      %s356 = scalar_select %p355, %s354, 3
      %s357 = smul.addr %s356, 8
      %s358 = scalar_lea.vmem %s5, %s357
      %s359 = smul.u32 2, %s17
      %p360 = scmp.lt.s32.totalorder %s17, 1
      %s361 = scalar_select %p360, %s17, 1
      %s362 = scalar_lea.vmem %s6, %s361
      %v364 = vld [vmem:[%s327] sm:$0xff]
      %v365 = vld [vmem:[%s327 + $0x8] sm:$0xff]
      %v366 = vld [vmem:[%s358] sm:$0xff]
      %v367 = vld [vmem:[%s358 + $0x8] sm:$0xff]
      %vm368 = vcmp.ge.f32.partialorder %v366, 0.0
      %vm369 = vcmp.ge.f32.partialorder %v367, 0.0
      %v370 = vsel %vm368, 1, 0
      %v371 = vsel %vm369, 1, 0
      %v372 = vcvt.s32.f32 %v370
      %v373 = vcvt.s32.f32 %v371
      %v374 = vlaneseq
      %v375 = vshrl.u32 %v374, 7
      %v376 = vcvt.s32.f32 %v375
      %v377 = vlaneseq
      %v378 = vshrl.u32 %v377, 7
      %v379 = vsub.s32 0, %v378
      %v380 = vrot.slane %v366, %v379
      %v381 = vlaneseq
      %v382 = vshrl.u32 %v381, 7
      %v383 = vsub.s32 0, %v382
      %v384 = vrot.slane %v367, %v383
      %vm385 = vcmp.eq.f32.partialorder %v376, %v380
      %vm386 = vcmp.eq.f32.partialorder %v376, %v384
      %v387 = vsel %vm385, 1, 0
      %v388 = vsel %vm386, 1, 0
      %v389 = vcvt.s32.f32 %v387
      %v390 = vcvt.s32.f32 %v388
      %vm391 = vcmask 64512
      %v392 = vsel %vm391, %v389, 0.0
      %393 = vadd.xlane.f32.xlu0 %v392
      %v394 = vpop.xlane.xlu0 %393
      %v395 = vsel %vm391, %v390, 0.0
      %396 = vadd.xlane.f32.xlu0 %v395
      %v397 = vpop.xlane.xlu0 %396
      %vm398 = vcmask 130048
      %v399 = vsel %vm398, %v364, -inf
      %400 = vmax.xlane.f32.xlu0 %v399
      %v401 = vpop.xlane.xlu0 %400
      %v402 = vsel %vm398, %v365, -inf
      %403 = vmax.xlane.f32.xlu0 %v402
      %v404 = vpop.xlane.xlu0 %403
      %v405 = vsub.f32 %v364, %v401
      %v406 = vsub.f32 %v365, %v404
      %v407 = vmul.f32 %v405, 1.442695
      %v408 = vpow.pop %v407
      %v409 = vmul.f32 %v406, 1.442695
      %v410 = vpow.pop %v409
      %v411 = vsel %vm398, %v408, 0.0
      %412 = vadd.xlane.f32.xlu0 %v411
      %v413 = vpop.xlane.xlu0 %412
      %v414 = vsel %vm398, %v410, 0.0
      %415 = vadd.xlane.f32.xlu0 %v414
      %v416 = vpop.xlane.xlu0 %415
      %v417 = vlog2.pop %v413
      %v418 = vmul.f32 %v417, 0.6931472
      %v419 = vlog2.pop %v416
      %v420 = vmul.f32 %v419, 0.6931472
      %v421 = vsub.f32 %v405, %v418
      %v422 = vsub.f32 %v406, %v420
      %v423 = vlaneseq
      %v424 = vand.u32 %v423, 127
      %vm425 = vcmp.eq.s32.totalorder %v424, 15
      %v426 = vsel %vm425, 1, 0
      %v427 = vcvt.s32.f32 %v426
      %v428 = vpack.c.bf16 %v389, %v389
      %v429 = vpack.c.bf16 %v390, %v390
      %v430 = vld [vmem:[%s352] sm:$0xf]
      %v431 = vld [vmem:[%s352 + $0x4] sm:$0xf]
      %v432 = vsub.f32 1.0, %v394
      %v433 = vsub.f32 1.0, %v397
      %v434 = vmul.f32 %v432, %v427
      %v435 = vmul.f32 %v433, %v427
      %v437 = vsel %vm391, %v428, 0
      %vm439 = vcmask 1043456
      %v441 = vsel %vm439, %v430, 0
      %443 = vmatprep.subr.bf16.mxu0 0
      %444 = vmatpush1.bf16.msra.mxu0 0
      %445 = vmatprep.subr.bf16.mxu0 0
      %446 = vmatpush1.bf16.msra.mxu0 0
      %447 = vmatprep.subr.bf16.mxu0 0
      %448 = vmatpush1.bf16.msra.mxu0 0
      %449 = vmatprep.subr.bf16.mxu0 0
      %450 = vmatpush1.bf16.msra.mxu0 0
      %451 = vmatprep.subr.bf16.mxu0 0
      %452 = vmatpush1.bf16.msra.mxu0 0
      %453 = vmatprep.subr.bf16.mxu0 0
      %454 = vmatpush1.bf16.msra.mxu0 0
      %455 = vmatprep.subr.bf16.mxu0 0
      %456 = vmatpush1.bf16.msra.mxu0 0
      %457 = vmatprep.subr.bf16.mxu0 0
      %458 = vmatpush1.bf16.msra.mxu0 %v441
      %459 = vmatprep.subr.bf16.mxu0 0
      %460 = vmatpush2.bf16.msra.mxu0 0
      %461 = vmatprep.subr.bf16.mxu0 0
      %462 = vmatpush2.bf16.msra.mxu0 0
      %463 = vmatprep.subr.bf16.mxu0 0
      %464 = vmatpush2.bf16.msra.mxu0 0
      %465 = vmatprep.subr.bf16.mxu0 0
      %466 = vmatpush2.bf16.msra.mxu0 0
      %467 = vmatprep.subr.bf16.mxu0 0
      %468 = vmatpush2.bf16.msra.mxu0 0
      %469 = vmatprep.subr.bf16.mxu0 0
      %470 = vmatpush2.bf16.msra.mxu0 0
      %471 = vmatprep.subr.bf16.mxu0 0
      %472 = vmatpush2.bf16.msra.mxu0 0
      %473 = vmatprep.subr.bf16.mxu0 0
      %474 = vmatpush2.bf16.msra.mxu0 0
      %475 = vmatprep.mubr.bf16.mxu0 0
      %476 = vmatmul.mubr.bf16.gmra.mxu0 %v437
      %v477 = vpop.f32.mrf.mxu0
      %v478 = vadd.f32 %v434, %v477
      %v479 = vpop.f32.mrf.mxu0
      %v480 = vpop.f32.mrf.mxu0
      %v481 = vpop.f32.mrf.mxu0
      %482 = vdwg.mxu0
      %v484 = vsel %vm391, %v429, 0
      %v487 = vsel %vm439, %v431, 0
      %489 = vmatprep.subr.bf16.mxu0 0
      %490 = vmatpush1.bf16.msra.mxu0 0
      %491 = vmatprep.subr.bf16.mxu0 0
      %492 = vmatpush1.bf16.msra.mxu0 0
      %493 = vmatprep.subr.bf16.mxu0 0
      %494 = vmatpush1.bf16.msra.mxu0 0
      %495 = vmatprep.subr.bf16.mxu0 0
      %496 = vmatpush1.bf16.msra.mxu0 0
      %497 = vmatprep.subr.bf16.mxu0 0
      %498 = vmatpush1.bf16.msra.mxu0 0
      %499 = vmatprep.subr.bf16.mxu0 0
      %500 = vmatpush1.bf16.msra.mxu0 0
      %501 = vmatprep.subr.bf16.mxu0 0
      %502 = vmatpush1.bf16.msra.mxu0 0
      %503 = vmatprep.subr.bf16.mxu0 0
      %504 = vmatpush1.bf16.msra.mxu0 %v487
      %505 = vmatprep.subr.bf16.mxu0 0
      %506 = vmatpush2.bf16.msra.mxu0 0
      %507 = vmatprep.subr.bf16.mxu0 0
      %508 = vmatpush2.bf16.msra.mxu0 0
      %509 = vmatprep.subr.bf16.mxu0 0
      %510 = vmatpush2.bf16.msra.mxu0 0
      %511 = vmatprep.subr.bf16.mxu0 0
      %512 = vmatpush2.bf16.msra.mxu0 0
      %513 = vmatprep.subr.bf16.mxu0 0
      %514 = vmatpush2.bf16.msra.mxu0 0
      %515 = vmatprep.subr.bf16.mxu0 0
      %516 = vmatpush2.bf16.msra.mxu0 0
      %517 = vmatprep.subr.bf16.mxu0 0
      %518 = vmatpush2.bf16.msra.mxu0 0
      %519 = vmatprep.subr.bf16.mxu0 0
      %520 = vmatpush2.bf16.msra.mxu0 0
      %521 = vmatprep.mubr.bf16.mxu0 0
      %522 = vmatmul.mubr.bf16.gmra.mxu0 %v484
      %v523 = vpop.f32.mrf.mxu0
      %v524 = vadd.f32 %v435, %v523
      %v525 = vpop.f32.mrf.mxu0
      %v526 = vpop.f32.mrf.mxu0
      %v527 = vpop.f32.mrf.mxu0
      %528 = vdwg.mxu0
      %v529 = vmul.f32 %v421, %v478
      %v530 = vmul.f32 %v422, %v524
      %v531 = vsel %vm398, %v529, 0.0
      %v532 = vsel %vm398, %v530, 0.0
      %v533 = vadd.f32 %v531, %v532
      %534 = vadd.xlane.f32.xlu0 %v533
      %v535 = vpop.xlane.xlu0 %534
      %v536 = vrot.slane %v535, 4
      %v537 = vadd.f32 %v535, %v536
      %v538 = vrot.slane %v537, 2
      %v539 = vadd.f32 %v537, %v538
      %v540 = vrot.slane %v539, 1
      %v541 = vadd.f32 %v539, %v540
      %s542 = vtos %v541
      %s543 = ssub.f32 0.0, %s542
      %v544 = vmul.f32 %v364, %v427
      %v545 = vmul.f32 %v365, %v427
      %v546 = vsel %vm398, %v544, 0.0
      %547 = vadd.xlane.f32.xlu0 %v546
      %v548 = vpop.xlane.xlu0 %547
      %v549 = vsel %vm398, %v545, 0.0
      %550 = vadd.xlane.f32.xlu0 %v549
      %v551 = vpop.xlane.xlu0 %550
      %vm552 = vcmp.gt.f32.partialorder %v427, 0.0
      %v553 = vsel %vm552, -1e+30, %v364
      %v554 = vsel %vm552, -1e+30, %v365
      %v555 = vsel %vm398, %v553, -inf
      %556 = vmax.xlane.f32.xlu0 %v555
      %v557 = vpop.xlane.xlu0 %556
      %v558 = vsel %vm398, %v554, -inf
      %559 = vmax.xlane.f32.xlu0 %v558
      %v560 = vpop.xlane.xlu0 %559
      %vm561 = vcmp.ge.f32.partialorder %v557, %v548
      %vm562 = vcmp.ge.f32.partialorder %v560, %v551
      %v563 = vsel %vm561, 1, 0
      %v564 = vsel %vm562, 1, 0
      %v565 = vcvt.s32.f32 %v563
      %v566 = vcvt.s32.f32 %v564
      %v567 = vrot.slane %v565, 4
      %v568 = vadd.f32 %v565, %v567
      %v569 = vrot.slane %v568, 2
      %v570 = vadd.f32 %v568, %v569
      %v571 = vrot.slane %v570, 1
      %v572 = vadd.f32 %v570, %v571
      %v573 = vrot.slane %v566, 4
      %v574 = vadd.f32 %v566, %v573
      %v575 = vrot.slane %v574, 2
      %v576 = vadd.f32 %v574, %v575
      %v577 = vrot.slane %v576, 1
      %v578 = vadd.f32 %v576, %v577
      %vm579 = vcmask 57344
      %v580 = vsel %vm579, %v372, 0.0
      %581 = vadd.xlane.f32.xlu0 %v580
      %v582 = vpop.xlane.xlu0 %581
      %v583 = vsel %vm579, %v373, 0.0
      %584 = vadd.xlane.f32.xlu0 %v583
      %v585 = vpop.xlane.xlu0 %584
      %v586 = vadd.f32 %v582, 0.0
      %v587 = vadd.f32 %v585, 0.0
      %v588 = vsub.f32 %v572, %v586
      %v589 = vsub.f32 %v578, %v587
      %v590 = vand.u32 2147483647, %v588
      %v591 = vand.u32 2147483647, %v589
      %vm592 = vcmask 0
      %v593 = vsel %vm592, %v590, 0.0
      %v594 = vsel %vm592, %v591, 0.0
      %v595 = vadd.f32 %v593, %v594
      %596 = vadd.xlane.f32.xlu0 %v595
      %v597 = vpop.xlane.xlu0 %596
      %v598 = vrot.slane %v597, 4
      %v599 = vadd.f32 %v597, %v598
      %v600 = vrot.slane %v599, 2
      %v601 = vadd.f32 %v599, %v600
      %v602 = vrot.slane %v601, 1
      %v603 = vadd.f32 %v601, %v602
      %s604 = vtos %v603
      %v605 = vld [vmem:[%s333] sm:$0xf]
      %v606 = vld [vmem:[%s333 + $0x4] sm:$0xf]
      %v607 = vld [vmem:[%s340] sm:$0xf]
      %v608 = vld [vmem:[%s340 + $0x4] sm:$0xf]
      %v609 = vld [vmem:[%s340 + $0x8] sm:$0xf]
      %v610 = vld [vmem:[%s340 + $0xc] sm:$0xf]
      %v611 = vld [vmem:[%s340 + $0x10] sm:$0xf]
      %v612 = vld [vmem:[%s340 + $0x14] sm:$0xf]
      %v613 = vld [vmem:[%s340 + $0x18] sm:$0xf]
      %v614 = vld [vmem:[%s340 + $0x1c] sm:$0xf]
      %v619 = vunpack.c.l.b16 %v607
      %v620 = vunpack.c.l.b16 %v608
      %v621 = vunpack.c.l.b16 %v609
      %v622 = vunpack.c.l.b16 %v610
      %v623 = vpack.c.b16 %v620, %v619
      %v624 = vpack.c.b16 %v622, %v621
      %vm627 = vcmask 261120
      %v629 = vsel %vm627, %v605, 0
      %631 = vmatprep.subr.bf16.mxu0 0
      %632 = vmatpush1.bf16.msra.mxu0 0
      %633 = vmatprep.subr.bf16.mxu0 0
      %634 = vmatpush1.bf16.msra.mxu0 0
      %635 = vmatprep.subr.bf16.mxu0 0
      %636 = vmatpush1.bf16.msra.mxu0 0
      %637 = vmatprep.subr.bf16.mxu0 0
      %638 = vmatpush1.bf16.msra.mxu0 0
      %639 = vmatprep.subr.bf16.mxu0 0
      %640 = vmatpush1.bf16.msra.mxu0 0
      %641 = vmatprep.subr.bf16.mxu0 0
      %642 = vmatpush1.bf16.msra.mxu0 0
      %643 = vmatprep.subr.bf16.mxu0 0
      %644 = vmatpush1.bf16.msra.mxu0 %v624
      %645 = vmatprep.subr.bf16.mxu0 0
      %646 = vmatpush1.bf16.msra.mxu0 %v623
      %647 = vmatprep.subr.bf16.mxu0 0
      %648 = vmatpush2.bf16.msra.mxu0 0
      %649 = vmatprep.subr.bf16.mxu0 0
      %650 = vmatpush2.bf16.msra.mxu0 0
      %651 = vmatprep.subr.bf16.mxu0 0
      %652 = vmatpush2.bf16.msra.mxu0 0
      %653 = vmatprep.subr.bf16.mxu0 0
      %654 = vmatpush2.bf16.msra.mxu0 0
      %655 = vmatprep.subr.bf16.mxu0 0
      %656 = vmatpush2.bf16.msra.mxu0 0
      %657 = vmatprep.subr.bf16.mxu0 0
      %658 = vmatpush2.bf16.msra.mxu0 0
      %659 = vmatprep.subr.bf16.mxu0 0
      %660 = vmatpush2.bf16.msra.mxu0 0
      %661 = vmatprep.subr.bf16.mxu0 0
      %662 = vmatpush2.bf16.msra.mxu0 0
      %663 = vmatprep.mubr.bf16.mxu0 0
      %664 = vmatmul.mubr.bf16.gmra.mxu0 %v629
      %v665 = vpop.f32.mrf.mxu0
      %v666 = vadd.f32 0.0, %v665
      %v667 = vpop.f32.mrf.mxu0
      %v668 = vpop.f32.mrf.mxu0
      %v669 = vpop.f32.mrf.mxu0
      %670 = vdwg.mxu0
      %v675 = vunpack.c.l.b16 %v611
      %v676 = vunpack.c.l.b16 %v612
      %v677 = vunpack.c.l.b16 %v613
      %v678 = vunpack.c.l.b16 %v614
      %v679 = vpack.c.b16 %v676, %v675
      %v680 = vpack.c.b16 %v678, %v677
      %v684 = vsel %vm627, %v606, 0
      %686 = vmatprep.subr.bf16.mxu0 0
      %687 = vmatpush1.bf16.msra.mxu0 0
      %688 = vmatprep.subr.bf16.mxu0 0
      %689 = vmatpush1.bf16.msra.mxu0 0
      %690 = vmatprep.subr.bf16.mxu0 0
      %691 = vmatpush1.bf16.msra.mxu0 0
      %692 = vmatprep.subr.bf16.mxu0 0
      %693 = vmatpush1.bf16.msra.mxu0 0
      %694 = vmatprep.subr.bf16.mxu0 0
      %695 = vmatpush1.bf16.msra.mxu0 0
      %696 = vmatprep.subr.bf16.mxu0 0
      %697 = vmatpush1.bf16.msra.mxu0 0
      %698 = vmatprep.subr.bf16.mxu0 0
      %699 = vmatpush1.bf16.msra.mxu0 %v680
      %700 = vmatprep.subr.bf16.mxu0 0
      %701 = vmatpush1.bf16.msra.mxu0 %v679
      %702 = vmatprep.subr.bf16.mxu0 0
      %703 = vmatpush2.bf16.msra.mxu0 0
      %704 = vmatprep.subr.bf16.mxu0 0
      %705 = vmatpush2.bf16.msra.mxu0 0
      %706 = vmatprep.subr.bf16.mxu0 0
      %707 = vmatpush2.bf16.msra.mxu0 0
      %708 = vmatprep.subr.bf16.mxu0 0
      %709 = vmatpush2.bf16.msra.mxu0 0
      %710 = vmatprep.subr.bf16.mxu0 0
      %711 = vmatpush2.bf16.msra.mxu0 0
      %712 = vmatprep.subr.bf16.mxu0 0
      %713 = vmatpush2.bf16.msra.mxu0 0
      %714 = vmatprep.subr.bf16.mxu0 0
      %715 = vmatpush2.bf16.msra.mxu0 0
      %716 = vmatprep.subr.bf16.mxu0 0
      %717 = vmatpush2.bf16.msra.mxu0 0
      %718 = vmatprep.mubr.bf16.mxu0 0
      %719 = vmatmul.mubr.bf16.gmra.mxu0 %v684
      %v720 = vpop.f32.mrf.mxu0
      %v721 = vadd.f32 0.0, %v720
      %v722 = vpop.f32.mrf.mxu0
      %v723 = vpop.f32.mrf.mxu0
      %v724 = vpop.f32.mrf.mxu0
      %725 = vdwg.mxu0
      %v726 = vmul.f32 %v666, 14.285714
      %v727 = vmul.f32 %v721, 14.285714
      %v728 = vlaneseq
      %v729 = vshrl.u32 %v728, 7
      %v730 = vsub.s32 1, %v729
      %v731 = vrot.slane %v366, %v730
      %v732 = vlaneseq
      %v733 = vshrl.u32 %v732, 7
      %v734 = vsub.s32 1, %v733
      %v735 = vrot.slane %v367, %v734
      %v736 = vmul.f32 %v389, %v731
      %v737 = vmul.f32 %v390, %v735
      %v738 = vsel %vm391, %v736, 0.0
      %739 = vadd.xlane.f32.xlu0 %v738
      %v740 = vpop.xlane.xlu0 %739
      %v741 = vsel %vm391, %v737, 0.0
      %742 = vadd.xlane.f32.xlu0 %v741
      %v743 = vpop.xlane.xlu0 %742
      %v744 = vcvt.s32.f32 %v424
      %vm745 = vcmp.eq.f32.partialorder %v744, %v740
      %vm746 = vcmp.eq.f32.partialorder %v744, %v743
      %v747 = vsel %vm745, 1, 0
      %v748 = vsel %vm746, 1, 0
      %v749 = vcvt.s32.f32 %v747
      %v750 = vcvt.s32.f32 %v748
      %v751 = vmul.f32 %v394, %v749
      %v752 = vmul.f32 %v397, %v750
      %v753 = vsel %vm398, %v726, -inf
      %754 = vmax.xlane.f32.xlu0 %v753
      %v755 = vpop.xlane.xlu0 %754
      %v756 = vsel %vm398, %v727, -inf
      %757 = vmax.xlane.f32.xlu0 %v756
      %v758 = vpop.xlane.xlu0 %757
      %v759 = vrot.slane %v755, 4
      %v760 = vmax.f32 %v755, %v759
      %v761 = vrot.slane %v760, 2
      %v762 = vmax.f32 %v760, %v761
      %v763 = vrot.slane %v762, 1
      %v764 = vmax.f32 %v762, %v763
      %v765 = vrot.slane %v758, 4
      %v766 = vmax.f32 %v758, %v765
      %v767 = vrot.slane %v766, 2
      %v768 = vmax.f32 %v766, %v767
      %v769 = vrot.slane %v768, 1
      %v770 = vmax.f32 %v768, %v769
      %v771 = vsub.f32 %v726, %v764
      %v772 = vsub.f32 %v727, %v770
      %v773 = vmul.f32 %v771, 1.442695
      %v774 = vpow.pop %v773
      %v775 = vmul.f32 %v772, 1.442695
      %v776 = vpow.pop %v775
      %v777 = vsel %vm398, %v774, 0.0
      %778 = vadd.xlane.f32.xlu0 %v777
      %v779 = vpop.xlane.xlu0 %778
      %v780 = vsel %vm398, %v776, 0.0
      %781 = vadd.xlane.f32.xlu0 %v780
      %v782 = vpop.xlane.xlu0 %781
      %v783 = vlog2.pop %v779
      %v784 = vmul.f32 %v783, 0.6931472
      %v785 = vlog2.pop %v782
      %v786 = vmul.f32 %v785, 0.6931472
      %v787 = vadd.f32 %v784, %v764
      %v788 = vadd.f32 %v786, %v770
      %v789 = vrot.slane %v777, 4
      %v790 = vadd.f32 %v777, %v789
      %v791 = vrot.slane %v790, 2
      %v792 = vadd.f32 %v790, %v791
      %v793 = vrot.slane %v792, 1
      %v794 = vadd.f32 %v792, %v793
      %v795 = vrot.slane %v780, 4
      %v796 = vadd.f32 %v780, %v795
      %v797 = vrot.slane %v796, 2
      %v798 = vadd.f32 %v796, %v797
      %v799 = vrot.slane %v798, 1
      %v800 = vadd.f32 %v798, %v799
      %v801 = vlog2.pop %v794
      %v802 = vmul.f32 %v801, 0.6931472
      %v803 = vlog2.pop %v800
      %v804 = vmul.f32 %v803, 0.6931472
      %v805 = vadd.f32 %v802, %v764
      %v806 = vadd.f32 %v804, %v770
      %v807 = vsub.f32 0.0, %v726
      %v808 = vsub.f32 0.0, %v727
      %v809 = vmul.f32 %v807, %v751
      %v810 = vmul.f32 %v808, %v752
      %v811 = vsel %vm398, %v809, 0.0
      %812 = vadd.xlane.f32.xlu0 %v811
      %v813 = vpop.xlane.xlu0 %812
      %v814 = vsel %vm398, %v810, 0.0
      %815 = vadd.xlane.f32.xlu0 %v814
      %v816 = vpop.xlane.xlu0 %815
      %v817 = vrot.slane %v811, 4
      %v818 = vadd.f32 %v811, %v817
      %v819 = vrot.slane %v818, 2
      %v820 = vadd.f32 %v818, %v819
      %v821 = vrot.slane %v820, 1
      %v822 = vadd.f32 %v820, %v821
      %v823 = vrot.slane %v814, 4
      %v824 = vadd.f32 %v814, %v823
      %v825 = vrot.slane %v824, 2
      %v826 = vadd.f32 %v824, %v825
      %v827 = vrot.slane %v826, 1
      %v828 = vadd.f32 %v826, %v827
      %v829 = vsel %vm398, %v751, 0.0
      %v830 = vrot.slane %v829, 4
      %v831 = vadd.f32 %v829, %v830
      %v832 = vrot.slane %v831, 2
      %v833 = vadd.f32 %v831, %v832
      %v834 = vrot.slane %v833, 1
      %v835 = vadd.f32 %v833, %v834
      %v836 = vsel %vm398, %v752, 0.0
      %v837 = vrot.slane %v836, 4
      %v838 = vadd.f32 %v836, %v837
      %v839 = vrot.slane %v838, 2
      %v840 = vadd.f32 %v838, %v839
      %v841 = vrot.slane %v840, 1
      %v842 = vadd.f32 %v840, %v841
      %vm843 = vcmp.gt.f32.partialorder %v394, 0.0
      %vm844 = vcmp.gt.f32.partialorder %v397, 0.0
      %v845 = vadd.f32 %v394, 1e-06
      %v846 = vadd.f32 %v397, 1e-06
      %v847 = vrcp.pop %v845
      %v848 = vmul.f32 %v813, %v847
      %v849 = vrcp.pop %v846
      %v850 = vmul.f32 %v816, %v849
      %v851 = vadd.f32 %v848, %v787
      %v852 = vadd.f32 %v850, %v788
      %v853 = vsel %vm843, %v851, 0.0
      %v854 = vsel %vm844, %v852, 0.0
      %vm855 = vcmask 7168
      %v856 = vsel %vm855, %v853, 0.0
      %v857 = vsel %vm855, %v854, 0.0
      %v858 = vadd.f32 %v856, %v857
      %859 = vadd.xlane.f32.xlu0 %v858
      %v860 = vpop.xlane.xlu0 %859
      %v861 = vrot.slane %v860, 4
      %v862 = vadd.f32 %v860, %v861
      %v863 = vrot.slane %v862, 2
      %v864 = vadd.f32 %v862, %v863
      %v865 = vrot.slane %v864, 1
      %v866 = vadd.f32 %v864, %v865
      %s867 = vtos %v866
      %vm868 = vcmp.gt.f32.partialorder %v835, 0.0
      %vm869 = vcmp.gt.f32.partialorder %v842, 0.0
      %v870 = vadd.f32 %v835, 1e-06
      %v871 = vadd.f32 %v842, 1e-06
      %v872 = vrcp.pop %v870
      %v873 = vmul.f32 %v822, %v872
      %v874 = vrcp.pop %v871
      %v875 = vmul.f32 %v828, %v874
      %v876 = vadd.f32 %v873, %v805
      %v877 = vadd.f32 %v875, %v806
      %v878 = vsel %vm868, %v876, 0.0
      %v879 = vsel %vm869, %v877, 0.0
      %vm880 = vcmask 122880
      %v881 = vsel %vm880, %v878, 0.0
      %v882 = vsel %vm880, %v879, 0.0
      %v883 = vadd.f32 %v881, %v882
      %884 = vadd.xlane.f32.xlu0 %v883
      %v885 = vpop.xlane.xlu0 %884
      %v886 = vrot.slane %v885, 4
      %v887 = vadd.f32 %v885, %v886
      %v888 = vrot.slane %v887, 2
      %v889 = vadd.f32 %v887, %v888
      %v890 = vrot.slane %v889, 1
      %v891 = vadd.f32 %v889, %v890
      %s892 = vtos %v891
      %s893 = sadd.f32 %s867, %s892
      %s894 = smul.f32 %s893, 0.5
      %v895 = vld [vmem:[%s346] sm:$0xff]
      %v896 = vld [vmem:[%s346 + $0x8] sm:$0xff]
      %898 = vset.pattern.permute.xlu0 0
      %899 = vperm.xlu0 %898, %v895
      %v900 = vpop.permute.xlu0 %899
      %903 = vset.pattern.permute.xlu0 0
      %904 = vperm.xlu0 %903, %v896
      %v905 = vpop.permute.xlu0 %904
      %v907 = vlaneseq
      %v908 = vshrl.u32 %v907, 7
      %v909 = vsub.s32 2, %v908
      %v910 = vrot.slane %v366, %v909
      %v911 = vlaneseq
      %v912 = vshrl.u32 %v911, 7
      %v913 = vsub.s32 2, %v912
      %v914 = vrot.slane %v367, %v913
      %v915 = vsub.f32 %v900, %v910
      %v916 = vsub.f32 %v905, %v914
      %v917 = vand.u32 2147483647, %v915
      %v918 = vand.u32 2147483647, %v916
      %919 = vset.pattern.permute.xlu0 1
      %920 = vperm.xlu0 %919, %v895
      %v921 = vpop.permute.xlu0 %920
      %923 = vset.pattern.permute.xlu0 1
      %924 = vperm.xlu0 %923, %v896
      %v925 = vpop.permute.xlu0 %924
      %v927 = vlaneseq
      %v928 = vshrl.u32 %v927, 7
      %v929 = vsub.s32 3, %v928
      %v930 = vrot.slane %v366, %v929
      %v931 = vlaneseq
      %v932 = vshrl.u32 %v931, 7
      %v933 = vsub.s32 3, %v932
      %v934 = vrot.slane %v367, %v933
      %v935 = vsub.f32 %v921, %v930
      %v936 = vsub.f32 %v925, %v934
      %v937 = vand.u32 2147483647, %v935
      %v938 = vand.u32 2147483647, %v936
      %v939 = vadd.f32 %v917, %v937
      %v940 = vadd.f32 %v918, %v938
      %941 = vset.pattern.permute.xlu0 2
      %942 = vperm.xlu0 %941, %v895
      %v943 = vpop.permute.xlu0 %942
      %945 = vset.pattern.permute.xlu0 2
      %946 = vperm.xlu0 %945, %v896
      %v947 = vpop.permute.xlu0 %946
      %v949 = vlaneseq
      %v950 = vshrl.u32 %v949, 7
      %v951 = vsub.s32 4, %v950
      %v952 = vrot.slane %v366, %v951
      %v953 = vlaneseq
      %v954 = vshrl.u32 %v953, 7
      %v955 = vsub.s32 4, %v954
      %v956 = vrot.slane %v367, %v955
      %v957 = vsub.f32 %v943, %v952
      %v958 = vsub.f32 %v947, %v956
      %v959 = vand.u32 2147483647, %v957
      %v960 = vand.u32 2147483647, %v958
      %v961 = vadd.f32 %v939, %v959
      %v962 = vadd.f32 %v940, %v960
      %963 = vset.pattern.permute.xlu0 3
      %964 = vperm.xlu0 %963, %v895
      %v965 = vpop.permute.xlu0 %964
      %967 = vset.pattern.permute.xlu0 3
      %968 = vperm.xlu0 %967, %v896
      %v969 = vpop.permute.xlu0 %968
      %v971 = vlaneseq
      %v972 = vshrl.u32 %v971, 7
      %v973 = vsub.s32 5, %v972
      %v974 = vrot.slane %v366, %v973
      %v975 = vlaneseq
      %v976 = vshrl.u32 %v975, 7
      %v977 = vsub.s32 5, %v976
      %v978 = vrot.slane %v367, %v977
      %v979 = vsub.f32 %v965, %v974
      %v980 = vsub.f32 %v969, %v978
      %v981 = vand.u32 2147483647, %v979
      %v982 = vand.u32 2147483647, %v980
      %v983 = vadd.f32 %v961, %v981
      %v984 = vadd.f32 %v962, %v982
      %v985 = vmul.f32 %v983, %v389
      %v986 = vmul.f32 %v984, %v390
      %v987 = vsel %vm391, %v985, 0.0
      %v988 = vsel %vm391, %v986, 0.0
      %v989 = vadd.f32 %v987, %v988
      %990 = vadd.xlane.f32.xlu0 %v989
      %v991 = vpop.xlane.xlu0 %990
      %v992 = vrot.slane %v991, 4
      %v993 = vadd.f32 %v991, %v992
      %v994 = vrot.slane %v993, 2
      %v995 = vadd.f32 %v993, %v994
      %v996 = vrot.slane %v995, 1
      %v997 = vadd.f32 %v995, %v996
      %s998 = vtos %v997
      %v999 = vmul.f32 %v895, 0.5
      %v1000 = vmul.f32 %v896, 0.5
      %1003 = vrot.lane.b32.xlu0 %v999, 126
      %v1004 = vpop.permute.xlu0 %1003
      %1005 = vrot.lane.b32.xlu0 %v1000, 126
      %v1006 = vpop.permute.xlu0 %1005
      %v1009 = vsub.f32 %v895, %v1004
      %v1010 = vsub.f32 %v896, %v1006
      %v1011 = vadd.f32 %v895, %v1004
      %v1012 = vadd.f32 %v896, %v1006
      %v1013 = vmul.f32 %v366, 0.5
      %v1014 = vmul.f32 %v367, 0.5
      %v1017 = vrot.slane %v1013, 2
      %v1018 = vrot.slane %v1014, 2
      %v1021 = vsub.f32 %v366, %v1017
      %v1022 = vsub.f32 %v367, %v1018
      %v1023 = vadd.f32 %v366, %v1017
      %v1024 = vadd.f32 %v367, %v1018
      %1025 = vrot.lane.b32.xlu0 %v895, 127
      %v1026 = vpop.permute.xlu0 %1025
      %1027 = vrot.lane.b32.xlu0 %v896, 127
      %v1028 = vpop.permute.xlu0 %1027
      %v1031 = vmul.f32 %v895, %v1026
      %v1032 = vmul.f32 %v896, %v1028
      %v1035 = vrot.slane %v366, 1
      %v1036 = vrot.slane %v367, 1
      %v1039 = vmul.f32 %v366, %v1035
      %v1040 = vmul.f32 %v367, %v1036
      %1042 = vset.pattern.permute.xlu0 0
      %1043 = vperm.xlu0 %1042, %v1011
      %v1044 = vpop.permute.xlu0 %1043
      %1047 = vset.pattern.permute.xlu0 0
      %1048 = vperm.xlu0 %1047, %v1012
      %v1049 = vpop.permute.xlu0 %1048
      %v1051 = vlaneseq
      %v1052 = vshrl.u32 %v1051, 7
      %v1053 = vsub.s32 2, %v1052
      %v1054 = vrot.slane %v1023, %v1053
      %v1055 = vlaneseq
      %v1056 = vshrl.u32 %v1055, 7
      %v1057 = vsub.s32 2, %v1056
      %v1058 = vrot.slane %v1024, %v1057
      %v1059 = vmin.f32 %v1044, %v1054
      %v1060 = vmin.f32 %v1049, %v1058
      %1062 = vset.pattern.permute.xlu0 0
      %1063 = vperm.xlu0 %1062, %v1009
      %v1064 = vpop.permute.xlu0 %1063
      %1067 = vset.pattern.permute.xlu0 0
      %1068 = vperm.xlu0 %1067, %v1010
      %v1069 = vpop.permute.xlu0 %1068
      %v1071 = vlaneseq
      %v1072 = vshrl.u32 %v1071, 7
      %v1073 = vsub.s32 2, %v1072
      %v1074 = vrot.slane %v1021, %v1073
      %v1075 = vlaneseq
      %v1076 = vshrl.u32 %v1075, 7
      %v1077 = vsub.s32 2, %v1076
      %v1078 = vrot.slane %v1022, %v1077
      %v1079 = vmax.f32 %v1064, %v1074
      %v1080 = vmax.f32 %v1069, %v1078
      %v1081 = vsub.f32 %v1059, %v1079
      %v1082 = vsub.f32 %v1060, %v1080
      %v1083 = vmax.f32 %v1081, 0.0
      %v1084 = vmax.f32 %v1082, 0.0
      %1085 = vset.pattern.permute.xlu0 1
      %1086 = vperm.xlu0 %1085, %v1011
      %v1087 = vpop.permute.xlu0 %1086
      %1089 = vset.pattern.permute.xlu0 1
      %1090 = vperm.xlu0 %1089, %v1012
      %v1091 = vpop.permute.xlu0 %1090
      %v1093 = vlaneseq
      %v1094 = vshrl.u32 %v1093, 7
      %v1095 = vsub.s32 3, %v1094
      %v1096 = vrot.slane %v1023, %v1095
      %v1097 = vlaneseq
      %v1098 = vshrl.u32 %v1097, 7
      %v1099 = vsub.s32 3, %v1098
      %v1100 = vrot.slane %v1024, %v1099
      %v1101 = vmin.f32 %v1087, %v1096
      %v1102 = vmin.f32 %v1091, %v1100
      %1103 = vset.pattern.permute.xlu0 1
      %1104 = vperm.xlu0 %1103, %v1009
      %v1105 = vpop.permute.xlu0 %1104
      %1107 = vset.pattern.permute.xlu0 1
      %1108 = vperm.xlu0 %1107, %v1010
      %v1109 = vpop.permute.xlu0 %1108
      %v1111 = vlaneseq
      %v1112 = vshrl.u32 %v1111, 7
      %v1113 = vsub.s32 3, %v1112
      %v1114 = vrot.slane %v1021, %v1113
      %v1115 = vlaneseq
      %v1116 = vshrl.u32 %v1115, 7
      %v1117 = vsub.s32 3, %v1116
      %v1118 = vrot.slane %v1022, %v1117
      %v1119 = vmax.f32 %v1105, %v1114
      %v1120 = vmax.f32 %v1109, %v1118
      %v1121 = vsub.f32 %v1101, %v1119
      %v1122 = vsub.f32 %v1102, %v1120
      %v1123 = vmax.f32 %v1121, 0.0
      %v1124 = vmax.f32 %v1122, 0.0
      %v1125 = vmul.f32 %v1083, %v1123
      %v1126 = vmul.f32 %v1084, %v1124
      %1128 = vset.pattern.permute.xlu0 2
      %1129 = vperm.xlu0 %1128, %v1031
      %v1130 = vpop.permute.xlu0 %1129
      %1133 = vset.pattern.permute.xlu0 2
      %1134 = vperm.xlu0 %1133, %v1032
      %v1135 = vpop.permute.xlu0 %1134
      %v1137 = vlaneseq
      %v1138 = vshrl.u32 %v1137, 7
      %v1139 = vsub.s32 4, %v1138
      %v1140 = vrot.slane %v1039, %v1139
      %v1141 = vlaneseq
      %v1142 = vshrl.u32 %v1141, 7
      %v1143 = vsub.s32 4, %v1142
      %v1144 = vrot.slane %v1040, %v1143
      %v1145 = vadd.f32 %v1130, %v1140
      %v1146 = vadd.f32 %v1135, %v1144
      %v1147 = vsub.f32 %v1145, %v1125
      %v1148 = vsub.f32 %v1146, %v1126
      %v1149 = vrcp.pop %v1147
      %v1150 = vmul.f32 %v1125, %v1149
      %v1151 = vrcp.pop %v1148
      %v1152 = vmul.f32 %v1126, %v1151
      %v1153 = vmax.f32 %v1044, %v1054
      %v1154 = vmax.f32 %v1049, %v1058
      %v1155 = vmin.f32 %v1064, %v1074
      %v1156 = vmin.f32 %v1069, %v1078
      %v1157 = vsub.f32 %v1153, %v1155
      %v1158 = vsub.f32 %v1154, %v1156
      %v1159 = vmax.f32 %v1087, %v1096
      %v1160 = vmax.f32 %v1091, %v1100
      %v1161 = vmin.f32 %v1105, %v1114
      %v1162 = vmin.f32 %v1109, %v1118
      %v1163 = vsub.f32 %v1159, %v1161
      %v1164 = vsub.f32 %v1160, %v1162
      %v1165 = vmul.f32 %v1157, %v1163
      %v1166 = vmul.f32 %v1158, %v1164
      %v1167 = vsub.f32 %v1165, %v1147
      %v1168 = vsub.f32 %v1166, %v1148
      %v1169 = vrcp.pop %v1165
      %v1170 = vmul.f32 %v1167, %v1169
      %v1171 = vrcp.pop %v1166
      %v1172 = vmul.f32 %v1168, %v1171
      %v1173 = vsub.f32 %v1150, %v1170
      %v1174 = vsub.f32 %v1152, %v1172
      %v1175 = vsub.f32 1.0, %v1173
      %v1176 = vsub.f32 1.0, %v1174
      %v1177 = vmul.f32 %v1175, %v389
      %v1178 = vmul.f32 %v1176, %v390
      %v1179 = vsel %vm391, %v1177, 0.0
      %v1180 = vsel %vm391, %v1178, 0.0
      %v1181 = vadd.f32 %v1179, %v1180
      %1182 = vadd.xlane.f32.xlu0 %v1181
      %v1183 = vpop.xlane.xlu0 %1182
      %v1184 = vrot.slane %v1183, 4
      %v1185 = vadd.f32 %v1183, %v1184
      %v1186 = vrot.slane %v1185, 2
      %v1187 = vadd.f32 %v1185, %v1186
      %v1188 = vrot.slane %v1187, 1
      %v1189 = vadd.f32 %v1187, %v1188
      %s1190 = vtos %v1189
      %vm1191 = vcmp.eq.s32.totalorder %v424, 0
      %v1192 = vstv %s543
      %v1193 = vsel %vm1191, %v1192, 0.0
      %vm1194 = vcmp.eq.s32.totalorder %v424, 1
      %v1195 = vstv %s894
      %v1196 = vsel %vm1194, %v1195, 0.0
      %v1197 = vadd.f32 %v1193, %v1196
      %vm1198 = vcmp.eq.s32.totalorder %v424, 2
      %v1199 = vstv %s604
      %v1200 = vsel %vm1198, %v1199, 0.0
      %v1201 = vadd.f32 %v1197, %v1200
      %vm1202 = vcmp.eq.s32.totalorder %v424, 3
      %v1203 = vstv %s998
      %v1204 = vsel %vm1202, %v1203, 0.0
      %v1205 = vadd.f32 %v1201, %v1204
      %vm1206 = vcmp.eq.s32.totalorder %v424, 4
      %v1207 = vstv %s1190
      %v1208 = vsel %vm1206, %v1207, 0.0
      %v1209 = vadd.f32 %v1205, %v1208
      %1210 = vst [vmem:[%s362] sm:$0x1] %v1209
      %p1211 = scmp.lt.s32.totalorder %s17, 1
      %s1212 = scalar_select %p1211, %s17, 1
      %s1213 = scalar_lea.vmem %s6, %s1212
      // Predicated region
      $region45: #{_tgod_forward.1} parent=43 // pred_check
        %p1214 = pneg %p191
      $region46: #{_tgod_forward.1} parent=43 // pred_check_branch
        %1216 = sbr.rel (%p1214) target = $region48
      $region47: #{_tgod_forward.1} parent=43 // pred_region
        _
      $region48: #{_tgod_forward.1} parent=43 // pred_fallthru
        _
    $region44: #{_tgod_forward.1} parent=5 // pred_fallthru
      _
    %p1217 = scmp.le.s32.totalorder 2, %s12
    // Predicated region
    $region49: #{_tgod_forward.1} parent=5 // pred_check
      %p1218 = pneg %p1217
    $region50: #{_tgod_forward.1} parent=5 // pred_check_branch
      %1220 = sbr.rel (%p1218) target = $region52
    $region51: #{_tgod_forward.1} parent=5 // pred_region
      %s1221 = ssub.s32 %s12, 2
      // Predicated region
      $region53: #{_tgod_forward.1} parent=51 // pred_check
        %p1222 = pneg %p197
      $region54: #{_tgod_forward.1} parent=51 // pred_check_branch
        %1224 = sbr.rel (%p1222) target = $region56
      $region55: #{_tgod_forward.1} parent=51 // pred_region
        %p1225 = scmp.lt.s32.totalorder %s18, 1
        %s1226 = scalar_select %p1225, %s18, 1
        %s1227 = scalar_lea.vmem %s6, %s1226
      $region56: #{_tgod_forward.1} parent=51 // pred_fallthru
        _
    $region52: #{_tgod_forward.1} parent=5 // pred_fallthru
      _
  $region6: #{_tgod_forward.1} parent=0 // loop_footer
    %s16 = sadd.s32 1, %s12
  $region7: #{_tgod_forward.1} parent=0 // loop_footer_branch
    %11 = sbr.rel target = $region3
  $region8: #{_tgod_forward.1} parent=0 // loop_exit
    _

</llo_original>
